<compile_context>
chip_gen: v5e
topology: v5e:2x2
jax: 0.10.0
libtpu: 0.0.40
codegen_flags: <defaults>
</compile_context>

<pallas_src>
import functools

import jax
import jax.numpy as jnp
from jax.experimental import pallas as pl
from jax.experimental.pallas import tpu as pltpu


def fused_two_layer_gcn_kernel(a_ref, x_ref, w0_ref, b0_ref, w1_ref, b1_ref,
                               out_ref, feat_ref, h_ref, *, tm):
    """Grid = (layer, row_tile).  Pass 0 builds H = relu(A @ (X@W0') + b0') into VMEM scratch;
    pass 1 emits OUT = A @ (H@W1) + b1.  A_hat is resident in VMEM; a row tile is sliced per
    grid step with pl.ds (no re-streaming of A in pass 1)."""
    layer = pl.program_id(0)
    i = pl.program_id(1)

    # ---- per-pass preamble: feature transform computed ONCE (not per row tile) ----
    @pl.when(jnp.logical_and(layer == 0, i == 0))
    def _():
        feat_ref[...] = jnp.dot(
            x_ref[...], w0_ref[...], preferred_element_type=jnp.float32
        ).astype(feat_ref.dtype)

    @pl.when(jnp.logical_and(layer == 1, i == 0))
    def _():
        feat_ref[...] = jnp.dot(
            h_ref[...], w1_ref[...], preferred_element_type=jnp.float32
        ).astype(feat_ref.dtype)

    # ---- normalized-adjacency aggregation for this row tile (MXU, f32 accumulation) ----
    row0 = pl.multiple_of(i * tm, tm)
    a_rows = a_ref[pl.ds(row0, tm), :]
    agg = jnp.dot(a_rows, feat_ref[...], preferred_element_type=jnp.float32)

    @pl.when(layer == 0)
    def _():
        h = jnp.maximum(agg + b0_ref[...], 0.0)          # BN already folded into W0'/b0'
        h_ref[pl.ds(row0, tm), :] = h.astype(h_ref.dtype)

    @pl.when(layer == 1)
    def _():
        out_ref[...] = (agg + b1_ref[...]).astype(out_ref.dtype)


def _round_up(v, m):
    return ((v + m - 1) // m) * m


def _pad2(a, rows, cols, dtype):
    out = jnp.zeros((rows, cols), dtype)
    return out.at[: a.shape[0], : a.shape[1]].set(a.astype(dtype))


def build_gcn_norm_adj(edge_index, n_nodes):
    """Dense D^{-1/2} (A + I) D^{-1/2} from edge_index (plain-JAX glue).

    PyG GCNConv aggregates messages source -> target, so A[dst, src] = 1 and the degree is the
    in-degree (+ self-loop), matching torch_geometric's gcn_norm for directed edge_index too.
    """
    # TODO(synk): PyG gcn_norm strips & re-adds self-loops and counts duplicate edges per
    # occurrence; graphs with pre-existing self-loops / multi-edges differ slightly here.
    row, col = edge_index
    a = jnp.zeros((n_nodes, n_nodes), jnp.float32).at[col, row].set(1.0)
    a = a + jnp.eye(n_nodes, dtype=jnp.float32)
    deg = a.sum(axis=1)
    d_inv_sqrt = jax.lax.rsqrt(deg)
    return a * d_inv_sqrt[:, None] * d_inv_sqrt[None, :]


def _vmem_budget_bytes(n_pad, f_pad, c_pad, tm):
    """Derive a VMEM limit from the actual buffer sizes; cap under v7x's 64 MiB per-TC VMEM."""
    bf16, f32 = 2, 4
    a_bytes = 2 * n_pad * n_pad * bf16            # resident A (worst case: double-buffered)
    x_bytes = 2 * n_pad * f_pad * bf16            # resident X
    w_bytes = 2 * (f_pad * c_pad + c_pad * c_pad) * bf16 + 2 * 2 * c_pad * f32
    out_bytes = 2 * tm * c_pad * bf16             # double-buffered output tile
    scratch_bytes = 2 * n_pad * c_pad * bf16      # feat + H scratches
    total = a_bytes + x_bytes + w_bytes + out_bytes + scratch_bytes
    return min(max(2 * total + (4 << 20), 32 << 20), 48 << 20)


def attack_model_forward(params, x, edge_index):
    """AttackModel.forward(x, edge_index, predict=False) for model_name='Deep', GCN layers."""
    n, f_in = x.shape
    h0 = params["w0"].shape[1]
    h1 = params["w1"].shape[1]

    # ---- fold eval-mode BatchNorm1d into layer-0 weights/bias (wrapper-side, f32) ----
    scale = params["bn0_gamma"] * jax.lax.rsqrt(params["bn0_var"] + 1e-5)      # (1, H0)
    w0_fold = params["w0"] * scale                                              # (F_in, H0)
    b0_fold = (params["b0"] - params["bn0_mean"]) * scale + params["bn0_beta"]  # (1, H0)

    # ---- padded / lane-dense shapes ----
    tm = 256                                   # full MXU row occupancy on 256x256 generations
    n_pad = _round_up(n, tm)                   # divisible by tm (and by the 128-lane width)
    f_pad = _round_up(f_in, 128)
    c_pad = _round_up(max(h0, h1), 128)        # shared lane-dense channel width for H and OUT

    a_norm = build_gcn_norm_adj(edge_index, n)
    a_pad = _pad2(a_norm, n_pad, n_pad, jnp.bfloat16)
    x_pad = _pad2(x, n_pad, f_pad, jnp.bfloat16)
    w0_pad = _pad2(w0_fold, f_pad, c_pad, jnp.bfloat16)
    b0_pad = _pad2(b0_fold, 1, c_pad, jnp.float32)
    w1_pad = _pad2(params["w1"], c_pad, c_pad, jnp.bfloat16)
    b1_pad = _pad2(params["b1"], 1, c_pad, jnp.float32)

    n_tiles = n_pad // tm                      # tiny configs (e.g. N=256) -> grid = (2, 1)
    kernel = functools.partial(fused_two_layer_gcn_kernel, tm=tm)

    out_pad = pl.pallas_call(
        kernel,
        out_shape=jax.ShapeDtypeStruct((n_pad, c_pad), jnp.bfloat16),
        grid=(2, n_tiles),                                     # (layer pass, row tile)
        in_specs=[
            pl.BlockSpec((n_pad, n_pad), lambda l, i: (0, 0)),   # A_hat (resident, read ONCE)
            pl.BlockSpec((n_pad, f_pad), lambda l, i: (0, 0)),   # X (resident)
            pl.BlockSpec((f_pad, c_pad), lambda l, i: (0, 0)),   # W0' (BN folded)
            pl.BlockSpec((1, c_pad), lambda l, i: (0, 0)),       # b0'
            pl.BlockSpec((c_pad, c_pad), lambda l, i: (0, 0)),   # W1
            pl.BlockSpec((1, c_pad), lambda l, i: (0, 0)),       # b1
        ],
        # index (i*l, 0): constant during layer 0 (no spurious writeback of uninitialized
        # blocks), row-tiled during layer 1.
        out_specs=pl.BlockSpec((tm, c_pad), lambda l, i: (i * l, 0)),
        scratch_shapes=[
            pltpu.VMEM((n_pad, c_pad), jnp.bfloat16),  # feat = X@W0' (pass 0) / H@W1 (pass 1)
            pltpu.VMEM((n_pad, c_pad), jnp.bfloat16),  # H = relu'd hidden, persists pass0->pass1
        ],
        compiler_params=pltpu.CompilerParams(
            # pass 1 needs the full H from pass 0 and the i==0 preamble -> keep grid sequential
            dimension_semantics=("arbitrary", "arbitrary"),
            vmem_limit_bytes=_vmem_budget_bytes(n_pad, f_pad, c_pad, tm),
        ),
    )(a_pad, x_pad, w0_pad, b0_pad, w1_pad, b1_pad)

    # TODO(synk): dropout is identity in eval mode; predict=False so the predict() head is skipped.
    return out_pad[:n, :h1].astype(jnp.float32)


def reference_forward(params, x, edge_index):
    """Pure-f32 JAX replica of the PyTorch eval-mode forward (unfused, unfolded)."""
    a = build_gcn_norm_adj(edge_index, x.shape[0])
    h = a @ (x @ params["w0"]) + params["b0"]
    scale = params["bn0_gamma"] * jax.lax.rsqrt(params["bn0_var"] + 1e-5)
    h = (h - params["bn0_mean"]) * scale + params["bn0_beta"]
    h = jnp.maximum(h, 0.0)
    return a @ (h @ params["w1"]) + params["b1"]


if __name__ == "__main__":
    # Synthetic config matching kwargs = {'model_name': 'Deep', 'layer_name': 'GCN',
    #   'input': 32, 'hidden_layers': [32, 16], 'output': 4, 'dropout': 0.5,
    #   'down_task': 'node_classification', 'dataset': 'cora'}   (eval mode, predict=False)
    N, F_IN, H0, H1 = 256, 32, 32, 16

    key = jax.random.PRNGKey(0)
    keys = jax.random.split(key, 10)

    x = jax.random.normal(keys[0], (N, F_IN), dtype=jnp.float32)

    # Deterministic ring graph with symmetric edges: edge_index shape (2, 2N)
    src = jnp.arange(N, dtype=jnp.int32)
    dst = (src + 1) % N
    edge_index = jnp.stack([jnp.concatenate([src, dst]),
                            jnp.concatenate([dst, src])], axis=0)

    params = {
        "w0": 0.1 * jax.random.normal(keys[1], (F_IN, H0), dtype=jnp.float32),
        "b0": 0.1 * jax.random.normal(keys[2], (1, H0), dtype=jnp.float32),
        "bn0_gamma": 1.0 + 0.1 * jax.random.normal(keys[3], (1, H0), dtype=jnp.float32),
        "bn0_beta": 0.1 * jax.random.normal(keys[4], (1, H0), dtype=jnp.float32),
        "bn0_mean": 0.05 * jax.random.normal(keys[5], (1, H0), dtype=jnp.float32),
        "bn0_var": 0.5 + jnp.abs(jax.random.normal(keys[6], (1, H0), dtype=jnp.float32)),
        "w1": 0.1 * jax.random.normal(keys[7], (H0, H1), dtype=jnp.float32),
        "b1": 0.1 * jax.random.normal(keys[8], (1, H1), dtype=jnp.float32),
    }

    fwd = jax.jit(attack_model_forward)
    out = jax.block_until_ready(fwd(params, x, edge_index))
    ref = jax.block_until_ready(reference_forward(params, x, edge_index))

    assert out.shape == (N, H1)
    # bf16 operands + bf16 output store (f32 accumulation) vs pure-f32 reference.
    assert jnp.allclose(out, ref, atol=3e-2, rtol=3e-2), (
        f"max abs diff {jnp.max(jnp.abs(out - ref))}")

    print("KERNEL_OK")
</pallas_src>

<mosaic_0001>
module attributes {stable_mosaic.version = 11 : i64} {
  func.func @fused_two_layer_gcn_kernel(%arg0: i32, %arg1: i32, %arg2: memref<256x256xbf16, #tpu.memory_space<vmem>>, %arg3: memref<256x128xbf16, #tpu.memory_space<vmem>>, %arg4: memref<128x128xbf16, #tpu.memory_space<vmem>>, %arg5: memref<1x128xf32, #tpu.memory_space<vmem>>, %arg6: memref<128x128xbf16, #tpu.memory_space<vmem>>, %arg7: memref<1x128xf32, #tpu.memory_space<vmem>>, %arg8: memref<256x128xbf16, #tpu.memory_space<vmem>>, %arg9: memref<256x128xbf16, #tpu.memory_space<vmem>>, %arg10: memref<256x128xbf16, #tpu.memory_space<vmem>>) attributes {dimension_semantics = [#tpu.dimension_semantics<arbitrary>, #tpu.dimension_semantics<arbitrary>], iteration_bounds = array<i64: 2, 1>, scalar_prefetch = 0 : i64, scratch_operands = 2 : i64, tpu.core_type = #tpu.core_type<tc>, window_params = [{pipeline_mode = #tpu.pipeline_mode<synchronous>, transform_indices = @transform_0, window_bounds = array<i64: 256, 256>}, {pipeline_mode = #tpu.pipeline_mode<synchronous>, transform_indices = @transform_1, window_bounds = array<i64: 256, 128>}, {pipeline_mode = #tpu.pipeline_mode<synchronous>, transform_indices = @transform_2, window_bounds = array<i64: 128, 128>}, {pipeline_mode = #tpu.pipeline_mode<synchronous>, transform_indices = @transform_3, window_bounds = array<i64: 1, 128>}, {pipeline_mode = #tpu.pipeline_mode<synchronous>, transform_indices = @transform_4, window_bounds = array<i64: 128, 128>}, {pipeline_mode = #tpu.pipeline_mode<synchronous>, transform_indices = @transform_5, window_bounds = array<i64: 1, 128>}, {transform_indices = @transform_6, window_bounds = array<i64: 256, 128>}]} {
    %c0_i32 = arith.constant 0 : i32
    %0 = arith.cmpi eq, %arg0, %c0_i32 : i32
    %c0_i32_0 = arith.constant 0 : i32
    %1 = arith.cmpi eq, %arg1, %c0_i32_0 : i32
    %2 = arith.andi %0, %1 : i1
    %3 = arith.extui %2 : i1 to i32
    %c0_i32_1 = arith.constant 0 : i32
    %4 = arith.cmpi ne, %3, %c0_i32_1 : i32
    scf.if %4 {
      %c0_10 = arith.constant 0 : index
      %c0_11 = arith.constant 0 : index
      %22 = vector.load %arg3[%c0_10, %c0_11] : memref<256x128xbf16, #tpu.memory_space<vmem>>, vector<256x128xbf16>
      %c0_12 = arith.constant 0 : index
      %c0_13 = arith.constant 0 : index
      %23 = vector.load %arg4[%c0_12, %c0_13] : memref<128x128xbf16, #tpu.memory_space<vmem>>, vector<128x128xbf16>
      %cst_14 = arith.constant dense<0.000000e+00> : vector<256x128xf32>
      %24 = tpu.matmul %22, %23, %cst_14 {dimension_numbers = #tpu.dot_dimension_numbers<[1], [0], [0], [1], [0, 0, 1, 1], [], []>} : vector<256x128xbf16>, vector<128x128xbf16>, vector<256x128xf32> -> vector<256x128xf32>
      %25 = arith.truncf %24 : vector<256x128xf32> to vector<256x128xbf16>
      %c0_15 = arith.constant 0 : index
      %c0_16 = arith.constant 0 : index
      %26 = vector.load %arg9[%c0_15, %c0_16] : memref<256x128xbf16, #tpu.memory_space<vmem>>, vector<256x128xbf16>
      tpu.vector_store %arg9[%c0_15, %c0_16], %25 {strides = array<i32>} : memref<256x128xbf16, #tpu.memory_space<vmem>>, vector<256x128xbf16>,
    } else {
    }
    %c1_i32 = arith.constant 1 : i32
    %5 = arith.cmpi eq, %arg0, %c1_i32 : i32
    %c0_i32_2 = arith.constant 0 : i32
    %6 = arith.cmpi eq, %arg1, %c0_i32_2 : i32
    %7 = arith.andi %5, %6 : i1
    %8 = arith.extui %7 : i1 to i32
    %c0_i32_3 = arith.constant 0 : i32
    %9 = arith.cmpi ne, %8, %c0_i32_3 : i32
    scf.if %9 {
      %c0_10 = arith.constant 0 : index
      %c0_11 = arith.constant 0 : index
      %22 = vector.load %arg10[%c0_10, %c0_11] : memref<256x128xbf16, #tpu.memory_space<vmem>>, vector<256x128xbf16>
      %c0_12 = arith.constant 0 : index
      %c0_13 = arith.constant 0 : index
      %23 = vector.load %arg6[%c0_12, %c0_13] : memref<128x128xbf16, #tpu.memory_space<vmem>>, vector<128x128xbf16>
      %cst_14 = arith.constant dense<0.000000e+00> : vector<256x128xf32>
      %24 = tpu.matmul %22, %23, %cst_14 {dimension_numbers = #tpu.dot_dimension_numbers<[1], [0], [0], [1], [0, 0, 1, 1], [], []>} : vector<256x128xbf16>, vector<128x128xbf16>, vector<256x128xf32> -> vector<256x128xf32>
      %25 = arith.truncf %24 : vector<256x128xf32> to vector<256x128xbf16>
      %c0_15 = arith.constant 0 : index
      %c0_16 = arith.constant 0 : index
      %26 = vector.load %arg9[%c0_15, %c0_16] : memref<256x128xbf16, #tpu.memory_space<vmem>>, vector<256x128xbf16>
      tpu.vector_store %arg9[%c0_15, %c0_16], %25 {strides = array<i32>} : memref<256x128xbf16, #tpu.memory_space<vmem>>, vector<256x128xbf16>,
    } else {
    }
    %c256_i32 = arith.constant 256 : i32
    %10 = arith.muli %arg1, %c256_i32 : i32
    %11 = tpu.assume_multiple %10, 256 : i32
    %12 = arith.index_cast %11 : i32 to index
    %c0 = arith.constant 0 : index
    %13 = vector.load %arg2[%12, %c0] : memref<256x256xbf16, #tpu.memory_space<vmem>>, vector<256x256xbf16>
    %c0_4 = arith.constant 0 : index
    %c0_5 = arith.constant 0 : index
    %14 = vector.load %arg9[%c0_4, %c0_5] : memref<256x128xbf16, #tpu.memory_space<vmem>>, vector<256x128xbf16>
    %cst = arith.constant dense<0.000000e+00> : vector<256x128xf32>
    %15 = tpu.matmul %13, %14, %cst {dimension_numbers = #tpu.dot_dimension_numbers<[1], [0], [0], [1], [0, 0, 1, 1], [], []>} : vector<256x256xbf16>, vector<256x128xbf16>, vector<256x128xf32> -> vector<256x128xf32>
    %c0_i32_6 = arith.constant 0 : i32
    %16 = arith.cmpi eq, %arg0, %c0_i32_6 : i32
    %17 = arith.extui %16 : i1 to i32
    %c0_i32_7 = arith.constant 0 : i32
    %18 = arith.cmpi ne, %17, %c0_i32_7 : i32
    scf.if %18 {
      %c0_10 = arith.constant 0 : index
      %c0_11 = arith.constant 0 : index
      %22 = vector.load %arg5[%c0_10, %c0_11] : memref<1x128xf32, #tpu.memory_space<vmem>>, vector<1x128xf32>
      %23 = vector.broadcast %22 : vector<1x128xf32> to vector<256x128xf32>
      %24 = arith.addf %15, %23 : vector<256x128xf32>
      %cst_12 = arith.constant 0.000000e+00 : f32
      %25 = vector.broadcast %cst_12 : f32 to vector<256x128xf32>
      %26 = arith.maximumf %24, %25 : vector<256x128xf32>
      %27 = arith.truncf %26 : vector<256x128xf32> to vector<256x128xbf16>
      %28 = arith.index_cast %11 : i32 to index
      %c0_13 = arith.constant 0 : index
      %29 = vector.load %arg10[%28, %c0_13] : memref<256x128xbf16, #tpu.memory_space<vmem>>, vector<256x128xbf16>
      tpu.vector_store %arg10[%28, %c0_13], %27 {strides = array<i32>} : memref<256x128xbf16, #tpu.memory_space<vmem>>, vector<256x128xbf16>,
    } else {
    }
    %c1_i32_8 = arith.constant 1 : i32
    %19 = arith.cmpi eq, %arg0, %c1_i32_8 : i32
    %20 = arith.extui %19 : i1 to i32
    %c0_i32_9 = arith.constant 0 : i32
    %21 = arith.cmpi ne, %20, %c0_i32_9 : i32
    scf.if %21 {
      %c0_10 = arith.constant 0 : index
      %c0_11 = arith.constant 0 : index
      %22 = vector.load %arg7[%c0_10, %c0_11] : memref<1x128xf32, #tpu.memory_space<vmem>>, vector<1x128xf32>
      %23 = vector.broadcast %22 : vector<1x128xf32> to vector<256x128xf32>
      %24 = arith.addf %15, %23 : vector<256x128xf32>
      %25 = arith.truncf %24 : vector<256x128xf32> to vector<256x128xbf16>
      %c0_12 = arith.constant 0 : index
      %c0_13 = arith.constant 0 : index
      %26 = vector.load %arg8[%c0_12, %c0_13] : memref<256x128xbf16, #tpu.memory_space<vmem>>, vector<256x128xbf16>
      tpu.vector_store %arg8[%c0_12, %c0_13], %25 {strides = array<i32>} : memref<256x128xbf16, #tpu.memory_space<vmem>>, vector<256x128xbf16>,
    } else {
    }
    return
  }
  func.func @transform_0(%arg0: i32, %arg1: i32) -> (i32, i32) {
    %c0_i32 = arith.constant 0 : i32
    %c0_i32_0 = arith.constant 0 : i32
    %c0_i32_1 = arith.constant 0 : i32
    return %c0_i32, %c0_i32_0 : i32, i32
  }
  func.func @transform_1(%arg0: i32, %arg1: i32) -> (i32, i32) {
    %c0_i32 = arith.constant 0 : i32
    %c0_i32_0 = arith.constant 0 : i32
    %c0_i32_1 = arith.constant 0 : i32
    return %c0_i32, %c0_i32_0 : i32, i32
  }
  func.func @transform_2(%arg0: i32, %arg1: i32) -> (i32, i32) {
    %c0_i32 = arith.constant 0 : i32
    %c0_i32_0 = arith.constant 0 : i32
    %c0_i32_1 = arith.constant 0 : i32
    return %c0_i32, %c0_i32_0 : i32, i32
  }
  func.func @transform_3(%arg0: i32, %arg1: i32) -> (i32, i32) {
    %c0_i32 = arith.constant 0 : i32
    %c0_i32_0 = arith.constant 0 : i32
    %c0_i32_1 = arith.constant 0 : i32
    return %c0_i32, %c0_i32_0 : i32, i32
  }
  func.func @transform_4(%arg0: i32, %arg1: i32) -> (i32, i32) {
    %c0_i32 = arith.constant 0 : i32
    %c0_i32_0 = arith.constant 0 : i32
    %c0_i32_1 = arith.constant 0 : i32
    return %c0_i32, %c0_i32_0 : i32, i32
  }
  func.func @transform_5(%arg0: i32, %arg1: i32) -> (i32, i32) {
    %c0_i32 = arith.constant 0 : i32
    %c0_i32_0 = arith.constant 0 : i32
    %c0_i32_1 = arith.constant 0 : i32
    return %c0_i32, %c0_i32_0 : i32, i32
  }
  func.func @transform_6(%arg0: i32, %arg1: i32) -> (i32, i32) {
    %0 = arith.muli %arg1, %arg0 : i32
    %c0_i32 = arith.constant 0 : i32
    %c0_i32_0 = arith.constant 0 : i32
    return %0, %c0_i32 : i32, i32
  }
}

</mosaic_0001>

<llo_original>
// kernel: attack_model_forward.1
$region0: #{attack_model_forward.1}
  #allocation0 [shape = 'u32[]', space=smem, size = 0x4, offset = 0x4, fixed_abs, tag = 'smem constant byte address 0x4 - core index']
  #allocation1 [shape = 'u32[72,128]{1,0:T(1,128)}', space=vmem, size = 0x9000, scoped, tag = 'internal scratch']
  #allocation2 [shape = 'bf16[256,128]{1,0:T(8,128)(2,1)}', space=vmem, size = 0x10000, scoped, tag = 'scratch operand']
  #allocation3 [shape = 'bf16[256,128]{1,0:T(8,128)(2,1)}', space=vmem, size = 0x10000, scoped, tag = 'scratch operand']
  %s0 = inlined_call_operand.vmem [shape: bf16[256,256], index: 0, kind: input, shape index: {}]
  %s1 = inlined_call_operand.vmem [shape: bf16[256,128], index: 1, kind: input, shape index: {}]
  %s2 = inlined_call_operand.vmem [shape: bf16[128,128], index: 2, kind: input, shape index: {}]
  %s3 = inlined_call_operand.vmem [shape: f32[1,128], index: 3, kind: input, shape index: {}]
  %s4 = inlined_call_operand.vmem [shape: bf16[128,128], index: 4, kind: input, shape index: {}]
  %s5 = inlined_call_operand.vmem [shape: f32[1,128], index: 5, kind: input, shape index: {}]
  %s6 = inlined_call_operand.vmem [shape: bf16[256,128], index: 6, kind: output, shape index: {}]
  %s7 = sld [smem:[#allocation0]]
  $region73: #{attack_model_forward.1} parent=0
    _
  %s9 = ssub.s32 1, %s7
  %s10 = scalar_select 0, %s9, %s7
  loop: start=0, step=1, limit=4
  $region2: #{attack_model_forward.1} parent=0 // loop_pre_header
    _
  $region3: #{attack_model_forward.1} parent=0 // loop_header
    %s12 = sphi 0, %s16
    %p13 = scmp.ge.s32.totalorder %s12, 4
    %s19 = sphi 0, %s31
    %s20 = sphi 0, %s27
    %s21 = sphi 0, %s19
    %s22 = sphi 0, %s20
    %s23 = sphi 0, %s21
    %s24 = sphi 0, %s22
    %s32 = sphi 0, %s32
    %s34 = sphi 0, %s32
    %s35 = sphi 0, %s34
    %s49 = sphi 0, %s35
    %s53 = sphi 0, %s53
    %s55 = sphi 0, %s53
    %s56 = sphi 0, %s55
    %s70 = sphi 0, %s56
    %s74 = sphi 0, %s74
    %s76 = sphi 0, %s74
    %s77 = sphi 0, %s76
    %s91 = sphi 0, %s77
    %s95 = sphi 0, %s95
    %s97 = sphi 0, %s95
    %s98 = sphi 0, %s97
    %s112 = sphi 0, %s98
    %s116 = sphi 0, %s116
    %s118 = sphi 0, %s116
    %s119 = sphi 0, %s118
    %s133 = sphi 0, %s119
    %s137 = sphi 0, %s137
    %s139 = sphi 0, %s137
    %s140 = sphi 0, %s139
    %s154 = sphi 0, %s140
    %s162 = sphi 0, %s164
    %s165 = sphi 0, %s162
    %s166 = sphi 0, %s165
    %s182 = sphi 0, %s166
  $region4: #{attack_model_forward.1} parent=0 // loop_header_branch
    %15 = sbr.rel (%p13) target = $region8
  $region5: #{attack_model_forward.1} parent=0 // loop_body
    %s17 = ssub.s32 %s12, 1
    %s18 = ssub.s32 %s12, 2
    %s25 = sadd.s32 1, %s20
    %p26 = scmp.ge.s32.totalorder %s25, 1
    %s27 = scalar_select %p26, 0, %s25
    %s28 = sadd.s32 1, %s19
    %s29 = scalar_select %p26, %s28, %s19
    %p30 = scmp.ge.s32.totalorder %s29, 2
    %s31 = scalar_select %p30, 0, %s29
    %s33 = sadd.s32 %s32, 1
    %p36 = scmp.eq.s32.totalorder %s12, 1
    %p37 = scmp.ne.s32.totalorder %s32, %s34
    %p38 = scmp.eq.s32.totalorder %s12, 0
    %p39 = por %p37, %p38
    %p40 = scmp.ne.s32.totalorder %s32, %s34
    %p41 = scmp.eq.s32.totalorder %s17, 1
    %p42 = por %p40, %p41
    %p43 = scmp.ne.s32.totalorder %s34, %s35
    %p44 = scmp.eq.s32.totalorder %s17, 0
    %p45 = por %p43, %p44
    %p46 = scmp.ne.s32.totalorder %s34, %s35
    %p47 = scmp.eq.s32.totalorder %s18, 1
    %p48 = por %p46, %p47
    %p50 = scmp.ne.s32.totalorder %s35, %s49
    %p51 = scmp.eq.s32.totalorder %s18, 0
    %p52 = por %p50, %p51
    %s54 = sadd.s32 %s53, 1
    %p57 = scmp.eq.s32.totalorder %s12, 1
    %p58 = scmp.ne.s32.totalorder %s53, %s55
    %p59 = scmp.eq.s32.totalorder %s12, 0
    %p60 = por %p58, %p59
    %p61 = scmp.ne.s32.totalorder %s53, %s55
    %p62 = scmp.eq.s32.totalorder %s17, 1
    %p63 = por %p61, %p62
    %p64 = scmp.ne.s32.totalorder %s55, %s56
    %p65 = scmp.eq.s32.totalorder %s17, 0
    %p66 = por %p64, %p65
    %p67 = scmp.ne.s32.totalorder %s55, %s56
    %p68 = scmp.eq.s32.totalorder %s18, 1
    %p69 = por %p67, %p68
    %p71 = scmp.ne.s32.totalorder %s56, %s70
    %p72 = scmp.eq.s32.totalorder %s18, 0
    %p73 = por %p71, %p72
    %s75 = sadd.s32 %s74, 1
    %p78 = scmp.eq.s32.totalorder %s12, 1
    %p79 = scmp.ne.s32.totalorder %s74, %s76
    %p80 = scmp.eq.s32.totalorder %s12, 0
    %p81 = por %p79, %p80
    %p82 = scmp.ne.s32.totalorder %s74, %s76
    %p83 = scmp.eq.s32.totalorder %s17, 1
    %p84 = por %p82, %p83
    %p85 = scmp.ne.s32.totalorder %s76, %s77
    %p86 = scmp.eq.s32.totalorder %s17, 0
    %p87 = por %p85, %p86
    %p88 = scmp.ne.s32.totalorder %s76, %s77
    %p89 = scmp.eq.s32.totalorder %s18, 1
    %p90 = por %p88, %p89
    %p92 = scmp.ne.s32.totalorder %s77, %s91
    %p93 = scmp.eq.s32.totalorder %s18, 0
    %p94 = por %p92, %p93
    %s96 = sadd.s32 %s95, 1
    %p99 = scmp.eq.s32.totalorder %s12, 1
    %p100 = scmp.ne.s32.totalorder %s95, %s97
    %p101 = scmp.eq.s32.totalorder %s12, 0
    %p102 = por %p100, %p101
    %p103 = scmp.ne.s32.totalorder %s95, %s97
    %p104 = scmp.eq.s32.totalorder %s17, 1
    %p105 = por %p103, %p104
    %p106 = scmp.ne.s32.totalorder %s97, %s98
    %p107 = scmp.eq.s32.totalorder %s17, 0
    %p108 = por %p106, %p107
    %p109 = scmp.ne.s32.totalorder %s97, %s98
    %p110 = scmp.eq.s32.totalorder %s18, 1
    %p111 = por %p109, %p110
    %p113 = scmp.ne.s32.totalorder %s98, %s112
    %p114 = scmp.eq.s32.totalorder %s18, 0
    %p115 = por %p113, %p114
    %s117 = sadd.s32 %s116, 1
    %p120 = scmp.eq.s32.totalorder %s12, 1
    %p121 = scmp.ne.s32.totalorder %s116, %s118
    %p122 = scmp.eq.s32.totalorder %s12, 0
    %p123 = por %p121, %p122
    %p124 = scmp.ne.s32.totalorder %s116, %s118
    %p125 = scmp.eq.s32.totalorder %s17, 1
    %p126 = por %p124, %p125
    %p127 = scmp.ne.s32.totalorder %s118, %s119
    %p128 = scmp.eq.s32.totalorder %s17, 0
    %p129 = por %p127, %p128
    %p130 = scmp.ne.s32.totalorder %s118, %s119
    %p131 = scmp.eq.s32.totalorder %s18, 1
    %p132 = por %p130, %p131
    %p134 = scmp.ne.s32.totalorder %s119, %s133
    %p135 = scmp.eq.s32.totalorder %s18, 0
    %p136 = por %p134, %p135
    %s138 = sadd.s32 %s137, 1
    %p141 = scmp.eq.s32.totalorder %s12, 1
    %p142 = scmp.ne.s32.totalorder %s137, %s139
    %p143 = scmp.eq.s32.totalorder %s12, 0
    %p144 = por %p142, %p143
    %p145 = scmp.ne.s32.totalorder %s137, %s139
    %p146 = scmp.eq.s32.totalorder %s17, 1
    %p147 = por %p145, %p146
    %p148 = scmp.ne.s32.totalorder %s139, %s140
    %p149 = scmp.eq.s32.totalorder %s17, 0
    %p150 = por %p148, %p149
    %p151 = scmp.ne.s32.totalorder %s139, %s140
    %p152 = scmp.eq.s32.totalorder %s18, 1
    %p153 = por %p151, %p152
    %p155 = scmp.ne.s32.totalorder %s140, %s154
    %p156 = scmp.eq.s32.totalorder %s18, 0
    %p157 = por %p155, %p156
    %s158 = smul.u32 %s20, %s19
    %s159 = smul.u32 %s27, %s31
    %s160 = ssub.s32 %s158, %s159
    %p161 = scmp.eq.s32.totalorder %s160, 0
    %s163 = sadd.s32 %s162, 1
    %s164 = scalar_select %p161, %s162, %s163
    %p167 = pneg %p161
    %p168 = scmp.eq.s32.totalorder %s12, 1
    %p169 = por %p167, %p168
    %p170 = scmp.ne.s32.totalorder %s162, %s165
    %p171 = scmp.eq.s32.totalorder %s12, 0
    %p172 = por %p170, %p171
    %p173 = scmp.ne.s32.totalorder %s162, %s165
    %p174 = scmp.eq.s32.totalorder %s17, 1
    %p175 = por %p173, %p174
    %p176 = scmp.ne.s32.totalorder %s165, %s166
    %p177 = scmp.eq.s32.totalorder %s17, 0
    %p178 = por %p176, %p177
    %p179 = scmp.ne.s32.totalorder %s165, %s166
    %p180 = scmp.eq.s32.totalorder %s18, 1
    %p181 = por %p179, %p180
    %p183 = scmp.ne.s32.totalorder %s166, %s182
    %p184 = scmp.eq.s32.totalorder %s18, 0
    %p185 = por %p183, %p184
    %p186 = scmp.le.s32.totalorder 1, %s12
    %p187 = scmp.lt.s32.totalorder %s12, 3
    %p188 = pnand %p186, %p187
    %p189 = pneg %p188
    // Predicated region
    $region9: #{attack_model_forward.1} parent=5 // pred_check
      _
    $region10: #{attack_model_forward.1} parent=5 // pred_check_branch
      %191 = sbr.rel (%p188) target = $region12
    $region11: #{attack_model_forward.1} parent=5 // pred_region
      %s192 = ssub.s32 %s12, 1
      // Predicated region
      $region13: #{attack_model_forward.1} parent=11 // pred_check
        %p193 = pneg %p45
      $region14: #{attack_model_forward.1} parent=11 // pred_check_branch
        %195 = sbr.rel (%p193) target = $region16
      $region15: #{attack_model_forward.1} parent=11 // pred_region
        _
      $region16: #{attack_model_forward.1} parent=11 // pred_fallthru
        _
      // Predicated region
      $region17: #{attack_model_forward.1} parent=11 // pred_check
        %p196 = pneg %p66
      $region18: #{attack_model_forward.1} parent=11 // pred_check_branch
        %198 = sbr.rel (%p196) target = $region20
      $region19: #{attack_model_forward.1} parent=11 // pred_region
        _
      $region20: #{attack_model_forward.1} parent=11 // pred_fallthru
        _
      // Predicated region
      $region21: #{attack_model_forward.1} parent=11 // pred_check
        %p199 = pneg %p87
      $region22: #{attack_model_forward.1} parent=11 // pred_check_branch
        %201 = sbr.rel (%p199) target = $region24
      $region23: #{attack_model_forward.1} parent=11 // pred_region
        _
      $region24: #{attack_model_forward.1} parent=11 // pred_fallthru
        _
      // Predicated region
      $region25: #{attack_model_forward.1} parent=11 // pred_check
        %p202 = pneg %p108
      $region26: #{attack_model_forward.1} parent=11 // pred_check_branch
        %204 = sbr.rel (%p202) target = $region28
      $region27: #{attack_model_forward.1} parent=11 // pred_region
        _
      $region28: #{attack_model_forward.1} parent=11 // pred_fallthru
        _
      // Predicated region
      $region29: #{attack_model_forward.1} parent=11 // pred_check
        %p205 = pneg %p129
      $region30: #{attack_model_forward.1} parent=11 // pred_check_branch
        %207 = sbr.rel (%p205) target = $region32
      $region31: #{attack_model_forward.1} parent=11 // pred_region
        _
      $region32: #{attack_model_forward.1} parent=11 // pred_fallthru
        _
      // Predicated region
      $region33: #{attack_model_forward.1} parent=11 // pred_check
        %p208 = pneg %p150
      $region34: #{attack_model_forward.1} parent=11 // pred_check_branch
        %210 = sbr.rel (%p208) target = $region36
      $region35: #{attack_model_forward.1} parent=11 // pred_region
        _
      $region36: #{attack_model_forward.1} parent=11 // pred_fallthru
        _
    $region12: #{attack_model_forward.1} parent=5 // pred_fallthru
      _
    %p211 = scmp.lt.s32.totalorder %s12, 2
    // Predicated region
    $region37: #{attack_model_forward.1} parent=5 // pred_check
      %p212 = pneg %p211
    $region38: #{attack_model_forward.1} parent=5 // pred_check_branch
      %214 = sbr.rel (%p212) target = $region40
    $region39: #{attack_model_forward.1} parent=5 // pred_region
      _
    $region40: #{attack_model_forward.1} parent=5 // pred_fallthru
      _
    %p215 = scmp.le.s32.totalorder 1, %s12
    %p216 = scmp.lt.s32.totalorder %s12, 3
    %p217 = pnand %p215, %p216
    %p218 = pneg %p217
    // Predicated region
    $region41: #{attack_model_forward.1} parent=5 // pred_check
      _
    $region42: #{attack_model_forward.1} parent=5 // pred_check_branch
      %220 = sbr.rel (%p217) target = $region44
    $region43: #{attack_model_forward.1} parent=5 // pred_region
      %s221 = ssub.s32 %s12, 1
      %p222 = pneg %p45
      %p223 = pneg %p42
      %p224 = pneg %p66
      %p225 = pneg %p63
      %p226 = pneg %p87
      %p227 = pneg %p84
      %p228 = pneg %p108
      %p229 = pneg %p105
      %p230 = pneg %p129
      %p231 = pneg %p126
      %p232 = pneg %p150
      %p233 = pneg %p147
      %p234 = pneg %p178
      %p235 = pneg %p175
      %s236 = smul.u32 %s22, %s21
      %s237 = smul.u32 32, %s236
      %p238 = scmp.lt.s32.totalorder %s237, 31
      %s239 = scalar_select %p238, %s237, 31
      %s240 = smul.addr %s239, 4
      %s241 = scalar_lea.vmem %s6, %s240
      %s242 = smul.u32 %s22, %s21
      %s243 = smul.u32 32, %s242
      %p244 = scmp.lt.s32.totalorder %s243, 31
      %s245 = scalar_select %p244, %s243, 31
      %s246 = smul.addr %s245, 4
      %s247 = scalar_lea.vmem %s6, %s246
      %s248 = smul.u32 %s22, %s21
      %s249 = smul.u32 32, %s248
      %p250 = scmp.eq.s32.totalorder %s21, 0
      %p251 = scmp.eq.s32.totalorder %s22, 0
      %p252 = pnand %p250, %p251
      %p253 = pneg %p252
      // Predicated region
      $region45: #{attack_model_forward.1} parent=43 // pred_check
        _
      $region46: #{attack_model_forward.1} parent=43 // pred_check_branch
        %255 = sbr.rel (%p252) target = $region48
      $region47: #{attack_model_forward.1} parent=43 // pred_region
        %v256 = vld [vmem:[%s1] sm:$0xf]
        %v257 = vld [vmem:[%s1 + $0x4] sm:$0xf]
        %v258 = vld [vmem:[%s1 + $0x8] sm:$0xf]
        %v259 = vld [vmem:[%s1 + $0xc] sm:$0xf]
        %v260 = vld [vmem:[%s1 + $0x10] sm:$0xf]
        %v261 = vld [vmem:[%s1 + $0x14] sm:$0xf]
        %v262 = vld [vmem:[%s1 + $0x18] sm:$0xf]
        %v263 = vld [vmem:[%s1 + $0x1c] sm:$0xf]
        %v264 = vld [vmem:[%s1 + $0x20] sm:$0xf]
        %v265 = vld [vmem:[%s1 + $0x24] sm:$0xf]
        %v266 = vld [vmem:[%s1 + $0x28] sm:$0xf]
        %v267 = vld [vmem:[%s1 + $0x2c] sm:$0xf]
        %v268 = vld [vmem:[%s1 + $0x30] sm:$0xf]
        %v269 = vld [vmem:[%s1 + $0x34] sm:$0xf]
        %v270 = vld [vmem:[%s1 + $0x38] sm:$0xf]
        %v271 = vld [vmem:[%s1 + $0x3c] sm:$0xf]
        %v272 = vld [vmem:[%s1 + $0x40] sm:$0xf]
        %v273 = vld [vmem:[%s1 + $0x44] sm:$0xf]
        %v274 = vld [vmem:[%s1 + $0x48] sm:$0xf]
        %v275 = vld [vmem:[%s1 + $0x4c] sm:$0xf]
        %v276 = vld [vmem:[%s1 + $0x50] sm:$0xf]
        %v277 = vld [vmem:[%s1 + $0x54] sm:$0xf]
        %v278 = vld [vmem:[%s1 + $0x58] sm:$0xf]
        %v279 = vld [vmem:[%s1 + $0x5c] sm:$0xf]
        %v280 = vld [vmem:[%s1 + $0x60] sm:$0xf]
        %v281 = vld [vmem:[%s1 + $0x64] sm:$0xf]
        %v282 = vld [vmem:[%s1 + $0x68] sm:$0xf]
        %v283 = vld [vmem:[%s1 + $0x6c] sm:$0xf]
        %v284 = vld [vmem:[%s1 + $0x70] sm:$0xf]
        %v285 = vld [vmem:[%s1 + $0x74] sm:$0xf]
        %v286 = vld [vmem:[%s1 + $0x78] sm:$0xf]
        %v287 = vld [vmem:[%s1 + $0x7c] sm:$0xf]
        %v288 = vld [vmem:[%s2] sm:$0xf]
        %v289 = vld [vmem:[%s2 + $0x4] sm:$0xf]
        %v290 = vld [vmem:[%s2 + $0x8] sm:$0xf]
        %v291 = vld [vmem:[%s2 + $0xc] sm:$0xf]
        %v292 = vld [vmem:[%s2 + $0x10] sm:$0xf]
        %v293 = vld [vmem:[%s2 + $0x14] sm:$0xf]
        %v294 = vld [vmem:[%s2 + $0x18] sm:$0xf]
        %v295 = vld [vmem:[%s2 + $0x1c] sm:$0xf]
        %v296 = vld [vmem:[%s2 + $0x20] sm:$0xf]
        %v297 = vld [vmem:[%s2 + $0x24] sm:$0xf]
        %v298 = vld [vmem:[%s2 + $0x28] sm:$0xf]
        %v299 = vld [vmem:[%s2 + $0x2c] sm:$0xf]
        %v300 = vld [vmem:[%s2 + $0x30] sm:$0xf]
        %v301 = vld [vmem:[%s2 + $0x34] sm:$0xf]
        %v302 = vld [vmem:[%s2 + $0x38] sm:$0xf]
        %v303 = vld [vmem:[%s2 + $0x3c] sm:$0xf]
        %v336 = vunpack.c.l.b16 %v256
        %v337 = vunpack.c.l.b16 %v257
        %v338 = vunpack.c.l.b16 %v258
        %v339 = vunpack.c.l.b16 %v259
        %v340 = vunpack.c.l.b16 %v260
        %v341 = vunpack.c.l.b16 %v261
        %v342 = vunpack.c.l.b16 %v262
        %v343 = vunpack.c.l.b16 %v263
        %v344 = vunpack.c.l.b16 %v264
        %v345 = vunpack.c.l.b16 %v265
        %v346 = vunpack.c.l.b16 %v266
        %v347 = vunpack.c.l.b16 %v267
        %v348 = vunpack.c.l.b16 %v268
        %v349 = vunpack.c.l.b16 %v269
        %v350 = vunpack.c.l.b16 %v270
        %v351 = vunpack.c.l.b16 %v271
        %v352 = vunpack.c.l.b16 %v272
        %v353 = vunpack.c.l.b16 %v273
        %v354 = vunpack.c.l.b16 %v274
        %v355 = vunpack.c.l.b16 %v275
        %v356 = vunpack.c.l.b16 %v276
        %v357 = vunpack.c.l.b16 %v277
        %v358 = vunpack.c.l.b16 %v278
        %v359 = vunpack.c.l.b16 %v279
        %v360 = vunpack.c.l.b16 %v280
        %v361 = vunpack.c.l.b16 %v281
        %v362 = vunpack.c.l.b16 %v282
        %v363 = vunpack.c.l.b16 %v283
        %v364 = vunpack.c.l.b16 %v284
        %v365 = vunpack.c.l.b16 %v285
        %v366 = vunpack.c.l.b16 %v286
        %v367 = vunpack.c.l.b16 %v287
        %v368 = vpack.c.b16 %v337, %v336
        %v369 = vpack.c.b16 %v339, %v338
        %v370 = vpack.c.b16 %v341, %v340
        %v371 = vpack.c.b16 %v343, %v342
        %v372 = vpack.c.b16 %v345, %v344
        %v373 = vpack.c.b16 %v347, %v346
        %v374 = vpack.c.b16 %v349, %v348
        %v375 = vpack.c.b16 %v351, %v350
        %v376 = vpack.c.b16 %v353, %v352
        %v377 = vpack.c.b16 %v355, %v354
        %v378 = vpack.c.b16 %v357, %v356
        %v379 = vpack.c.b16 %v359, %v358
        %v380 = vpack.c.b16 %v361, %v360
        %v381 = vpack.c.b16 %v363, %v362
        %v382 = vpack.c.b16 %v365, %v364
        %v383 = vpack.c.b16 %v367, %v366
        %v416 = vunpack.c.l.b16 %v288
        %v417 = vunpack.c.l.b16 %v289
        %v418 = vunpack.c.l.b16 %v290
        %v419 = vunpack.c.l.b16 %v291
        %v420 = vunpack.c.l.b16 %v292
        %v421 = vunpack.c.l.b16 %v293
        %v422 = vunpack.c.l.b16 %v294
        %v423 = vunpack.c.l.b16 %v295
        %v424 = vunpack.c.l.b16 %v296
        %v425 = vunpack.c.l.b16 %v297
        %v426 = vunpack.c.l.b16 %v298
        %v427 = vunpack.c.l.b16 %v299
        %v428 = vunpack.c.l.b16 %v300
        %v429 = vunpack.c.l.b16 %v301
        %v430 = vunpack.c.l.b16 %v302
        %v431 = vunpack.c.l.b16 %v303
        %v432 = vpack.c.b16 %v417, %v416
        %v433 = vpack.c.b16 %v419, %v418
        %v434 = vpack.c.b16 %v421, %v420
        %v435 = vpack.c.b16 %v423, %v422
        %v436 = vpack.c.b16 %v425, %v424
        %v437 = vpack.c.b16 %v427, %v426
        %v438 = vpack.c.b16 %v429, %v428
        %v439 = vpack.c.b16 %v431, %v430
        %448 = vmatpush.bf16.msra.mxu0 %v439
        %449 = vmatpush.bf16.msra.mxu0 %v438
        %450 = vmatpush.bf16.msra.mxu0 %v437
        %451 = vmatpush.bf16.msra.mxu0 %v436
        %452 = vmatpush.bf16.msra.mxu0 %v435
        %453 = vmatpush.bf16.msra.mxu0 %v434
        %454 = vmatpush.bf16.msra.mxu0 %v433
        %455 = vmatpush.bf16.msra.mxu0 %v432
        %456 = vmatmul.bf16.gmra.mxu0 %v368
        %v457 = vpop.f32.mrf.mxu0
        %v458 = vadd.f32 0.0, %v457
        %v459 = vpop.f32.mrf.mxu0
        %v460 = vadd.f32 0.0, %v459
        %461 = vmatmul.bf16.gmra.mxu0 %v369
        %v462 = vpop.f32.mrf.mxu0
        %v463 = vadd.f32 0.0, %v462
        %v464 = vpop.f32.mrf.mxu0
        %v465 = vadd.f32 0.0, %v464
        %466 = vmatmul.bf16.gmra.mxu0 %v370
        %v467 = vpop.f32.mrf.mxu0
        %v468 = vadd.f32 0.0, %v467
        %v469 = vpop.f32.mrf.mxu0
        %v470 = vadd.f32 0.0, %v469
        %471 = vmatmul.bf16.gmra.mxu0 %v371
        %v472 = vpop.f32.mrf.mxu0
        %v473 = vadd.f32 0.0, %v472
        %v474 = vpop.f32.mrf.mxu0
        %v475 = vadd.f32 0.0, %v474
        %476 = vmatmul.bf16.gmra.mxu0 %v372
        %v477 = vpop.f32.mrf.mxu0
        %v478 = vadd.f32 0.0, %v477
        %v479 = vpop.f32.mrf.mxu0
        %v480 = vadd.f32 0.0, %v479
        %481 = vmatmul.bf16.gmra.mxu0 %v373
        %v482 = vpop.f32.mrf.mxu0
        %v483 = vadd.f32 0.0, %v482
        %v484 = vpop.f32.mrf.mxu0
        %v485 = vadd.f32 0.0, %v484
        %486 = vmatmul.bf16.gmra.mxu0 %v374
        %v487 = vpop.f32.mrf.mxu0
        %v488 = vadd.f32 0.0, %v487
        %v489 = vpop.f32.mrf.mxu0
        %v490 = vadd.f32 0.0, %v489
        %491 = vmatmul.bf16.gmra.mxu0 %v375
        %v492 = vpop.f32.mrf.mxu0
        %v493 = vadd.f32 0.0, %v492
        %v494 = vpop.f32.mrf.mxu0
        %v495 = vadd.f32 0.0, %v494
        %496 = vmatmul.bf16.gmra.mxu0 %v376
        %v497 = vpop.f32.mrf.mxu0
        %v498 = vadd.f32 0.0, %v497
        %v499 = vpop.f32.mrf.mxu0
        %v500 = vadd.f32 0.0, %v499
        %501 = vmatmul.bf16.gmra.mxu0 %v377
        %v502 = vpop.f32.mrf.mxu0
        %v503 = vadd.f32 0.0, %v502
        %v504 = vpop.f32.mrf.mxu0
        %v505 = vadd.f32 0.0, %v504
        %506 = vmatmul.bf16.gmra.mxu0 %v378
        %v507 = vpop.f32.mrf.mxu0
        %v508 = vadd.f32 0.0, %v507
        %v509 = vpop.f32.mrf.mxu0
        %v510 = vadd.f32 0.0, %v509
        %511 = vmatmul.bf16.gmra.mxu0 %v379
        %v512 = vpop.f32.mrf.mxu0
        %v513 = vadd.f32 0.0, %v512
        %v514 = vpop.f32.mrf.mxu0
        %v515 = vadd.f32 0.0, %v514
        %516 = vmatmul.bf16.gmra.mxu0 %v380
        %v517 = vpop.f32.mrf.mxu0
        %v518 = vadd.f32 0.0, %v517
        %v519 = vpop.f32.mrf.mxu0
        %v520 = vadd.f32 0.0, %v519
        %521 = vmatmul.bf16.gmra.mxu0 %v381
        %v522 = vpop.f32.mrf.mxu0
        %v523 = vadd.f32 0.0, %v522
        %v524 = vpop.f32.mrf.mxu0
        %v525 = vadd.f32 0.0, %v524
        %526 = vmatmul.bf16.gmra.mxu0 %v382
        %v527 = vpop.f32.mrf.mxu0
        %v528 = vadd.f32 0.0, %v527
        %v529 = vpop.f32.mrf.mxu0
        %v530 = vadd.f32 0.0, %v529
        %531 = vmatmul.bf16.gmra.mxu0 %v383
        %v532 = vpop.f32.mrf.mxu0
        %v533 = vadd.f32 0.0, %v532
        %v534 = vpop.f32.mrf.mxu0
        %v535 = vadd.f32 0.0, %v534
        %536 = vdwg.mxu0
        %v537 = vpack.c.bf16 %v458, %v458
        %v538 = vpack.c.bf16 %v460, %v460
        %v539 = vpack.c.bf16 %v463, %v463
        %v540 = vpack.c.bf16 %v465, %v465
        %v541 = vpack.c.bf16 %v468, %v468
        %v542 = vpack.c.bf16 %v470, %v470
        %v543 = vpack.c.bf16 %v473, %v473
        %v544 = vpack.c.bf16 %v475, %v475
        %v545 = vpack.c.bf16 %v478, %v478
        %v546 = vpack.c.bf16 %v480, %v480
        %v547 = vpack.c.bf16 %v483, %v483
        %v548 = vpack.c.bf16 %v485, %v485
        %v549 = vpack.c.bf16 %v488, %v488
        %v550 = vpack.c.bf16 %v490, %v490
        %v551 = vpack.c.bf16 %v493, %v493
        %v552 = vpack.c.bf16 %v495, %v495
        %v553 = vpack.c.bf16 %v498, %v498
        %v554 = vpack.c.bf16 %v500, %v500
        %v555 = vpack.c.bf16 %v503, %v503
        %v556 = vpack.c.bf16 %v505, %v505
        %v557 = vpack.c.bf16 %v508, %v508
        %v558 = vpack.c.bf16 %v510, %v510
        %v559 = vpack.c.bf16 %v513, %v513
        %v560 = vpack.c.bf16 %v515, %v515
        %v561 = vpack.c.bf16 %v518, %v518
        %v562 = vpack.c.bf16 %v520, %v520
        %v563 = vpack.c.bf16 %v523, %v523
        %v564 = vpack.c.bf16 %v525, %v525
        %v565 = vpack.c.bf16 %v528, %v528
        %v566 = vpack.c.bf16 %v530, %v530
        %v567 = vpack.c.bf16 %v533, %v533
        %v568 = vpack.c.bf16 %v535, %v535
        %569 = vst [vmem:[#allocation2] sm:$0xf] %v537
        %570 = vst [vmem:[#allocation2 + $0x4] sm:$0xf] %v538
        %571 = vst [vmem:[#allocation2 + $0x8] sm:$0xf] %v539
        %572 = vst [vmem:[#allocation2 + $0xc] sm:$0xf] %v540
        %573 = vst [vmem:[#allocation2 + $0x10] sm:$0xf] %v541
        %574 = vst [vmem:[#allocation2 + $0x14] sm:$0xf] %v542
        %575 = vst [vmem:[#allocation2 + $0x18] sm:$0xf] %v543
        %576 = vst [vmem:[#allocation2 + $0x1c] sm:$0xf] %v544
        %577 = vst [vmem:[#allocation2 + $0x20] sm:$0xf] %v545
        %578 = vst [vmem:[#allocation2 + $0x24] sm:$0xf] %v546
        %579 = vst [vmem:[#allocation2 + $0x28] sm:$0xf] %v547
        %580 = vst [vmem:[#allocation2 + $0x2c] sm:$0xf] %v548
        %581 = vst [vmem:[#allocation2 + $0x30] sm:$0xf] %v549
        %582 = vst [vmem:[#allocation2 + $0x34] sm:$0xf] %v550
        %583 = vst [vmem:[#allocation2 + $0x38] sm:$0xf] %v551
        %584 = vst [vmem:[#allocation2 + $0x3c] sm:$0xf] %v552
        %585 = vst [vmem:[#allocation2 + $0x40] sm:$0xf] %v553
        %586 = vst [vmem:[#allocation2 + $0x44] sm:$0xf] %v554
        %587 = vst [vmem:[#allocation2 + $0x48] sm:$0xf] %v555
        %588 = vst [vmem:[#allocation2 + $0x4c] sm:$0xf] %v556
        %589 = vst [vmem:[#allocation2 + $0x50] sm:$0xf] %v557
        %590 = vst [vmem:[#allocation2 + $0x54] sm:$0xf] %v558
        %591 = vst [vmem:[#allocation2 + $0x58] sm:$0xf] %v559
        %592 = vst [vmem:[#allocation2 + $0x5c] sm:$0xf] %v560
        %593 = vst [vmem:[#allocation2 + $0x60] sm:$0xf] %v561
        %594 = vst [vmem:[#allocation2 + $0x64] sm:$0xf] %v562
        %595 = vst [vmem:[#allocation2 + $0x68] sm:$0xf] %v563
        %596 = vst [vmem:[#allocation2 + $0x6c] sm:$0xf] %v564
        %597 = vst [vmem:[#allocation2 + $0x70] sm:$0xf] %v565
        %598 = vst [vmem:[#allocation2 + $0x74] sm:$0xf] %v566
        %599 = vst [vmem:[#allocation2 + $0x78] sm:$0xf] %v567
        %600 = vst [vmem:[#allocation2 + $0x7c] sm:$0xf] %v568
      $region48: #{attack_model_forward.1} parent=43 // pred_fallthru
        _
      %p601 = scmp.eq.s32.totalorder %s21, 1
      %p602 = pnand %p601, %p251
      %p603 = pneg %p602
      // Predicated region
      $region49: #{attack_model_forward.1} parent=43 // pred_check
        _
      $region50: #{attack_model_forward.1} parent=43 // pred_check_branch
        %605 = sbr.rel (%p602) target = $region52
      $region51: #{attack_model_forward.1} parent=43 // pred_region
        %v606 = vld [vmem:[#allocation3] sm:$0xf]
        %v607 = vld [vmem:[#allocation3 + $0x4] sm:$0xf]
        %v608 = vld [vmem:[#allocation3 + $0x8] sm:$0xf]
        %v609 = vld [vmem:[#allocation3 + $0xc] sm:$0xf]
        %v610 = vld [vmem:[#allocation3 + $0x10] sm:$0xf]
        %v611 = vld [vmem:[#allocation3 + $0x14] sm:$0xf]
        %v612 = vld [vmem:[#allocation3 + $0x18] sm:$0xf]
        %v613 = vld [vmem:[#allocation3 + $0x1c] sm:$0xf]
        %v614 = vld [vmem:[#allocation3 + $0x20] sm:$0xf]
        %v615 = vld [vmem:[#allocation3 + $0x24] sm:$0xf]
        %v616 = vld [vmem:[#allocation3 + $0x28] sm:$0xf]
        %v617 = vld [vmem:[#allocation3 + $0x2c] sm:$0xf]
        %v618 = vld [vmem:[#allocation3 + $0x30] sm:$0xf]
        %v619 = vld [vmem:[#allocation3 + $0x34] sm:$0xf]
        %v620 = vld [vmem:[#allocation3 + $0x38] sm:$0xf]
        %v621 = vld [vmem:[#allocation3 + $0x3c] sm:$0xf]
        %v622 = vld [vmem:[#allocation3 + $0x40] sm:$0xf]
        %v623 = vld [vmem:[#allocation3 + $0x44] sm:$0xf]
        %v624 = vld [vmem:[#allocation3 + $0x48] sm:$0xf]
        %v625 = vld [vmem:[#allocation3 + $0x4c] sm:$0xf]
        %v626 = vld [vmem:[#allocation3 + $0x50] sm:$0xf]
        %v627 = vld [vmem:[#allocation3 + $0x54] sm:$0xf]
        %v628 = vld [vmem:[#allocation3 + $0x58] sm:$0xf]
        %v629 = vld [vmem:[#allocation3 + $0x5c] sm:$0xf]
        %v630 = vld [vmem:[#allocation3 + $0x60] sm:$0xf]
        %v631 = vld [vmem:[#allocation3 + $0x64] sm:$0xf]
        %v632 = vld [vmem:[#allocation3 + $0x68] sm:$0xf]
        %v633 = vld [vmem:[#allocation3 + $0x6c] sm:$0xf]
        %v634 = vld [vmem:[#allocation3 + $0x70] sm:$0xf]
        %v635 = vld [vmem:[#allocation3 + $0x74] sm:$0xf]
        %v636 = vld [vmem:[#allocation3 + $0x78] sm:$0xf]
        %v637 = vld [vmem:[#allocation3 + $0x7c] sm:$0xf]
        %v638 = vld [vmem:[%s4] sm:$0xf]
        %v639 = vld [vmem:[%s4 + $0x4] sm:$0xf]
        %v640 = vld [vmem:[%s4 + $0x8] sm:$0xf]
        %v641 = vld [vmem:[%s4 + $0xc] sm:$0xf]
        %v642 = vld [vmem:[%s4 + $0x10] sm:$0xf]
        %v643 = vld [vmem:[%s4 + $0x14] sm:$0xf]
        %v644 = vld [vmem:[%s4 + $0x18] sm:$0xf]
        %v645 = vld [vmem:[%s4 + $0x1c] sm:$0xf]
        %v646 = vld [vmem:[%s4 + $0x20] sm:$0xf]
        %v647 = vld [vmem:[%s4 + $0x24] sm:$0xf]
        %v648 = vld [vmem:[%s4 + $0x28] sm:$0xf]
        %v649 = vld [vmem:[%s4 + $0x2c] sm:$0xf]
        %v650 = vld [vmem:[%s4 + $0x30] sm:$0xf]
        %v651 = vld [vmem:[%s4 + $0x34] sm:$0xf]
        %v652 = vld [vmem:[%s4 + $0x38] sm:$0xf]
        %v653 = vld [vmem:[%s4 + $0x3c] sm:$0xf]
        %v686 = vunpack.c.l.b16 %v606
        %v687 = vunpack.c.l.b16 %v607
        %v688 = vunpack.c.l.b16 %v608
        %v689 = vunpack.c.l.b16 %v609
        %v690 = vunpack.c.l.b16 %v610
        %v691 = vunpack.c.l.b16 %v611
        %v692 = vunpack.c.l.b16 %v612
        %v693 = vunpack.c.l.b16 %v613
        %v694 = vunpack.c.l.b16 %v614
        %v695 = vunpack.c.l.b16 %v615
        %v696 = vunpack.c.l.b16 %v616
        %v697 = vunpack.c.l.b16 %v617
        %v698 = vunpack.c.l.b16 %v618
        %v699 = vunpack.c.l.b16 %v619
        %v700 = vunpack.c.l.b16 %v620
        %v701 = vunpack.c.l.b16 %v621
        %v702 = vunpack.c.l.b16 %v622
        %v703 = vunpack.c.l.b16 %v623
        %v704 = vunpack.c.l.b16 %v624
        %v705 = vunpack.c.l.b16 %v625
        %v706 = vunpack.c.l.b16 %v626
        %v707 = vunpack.c.l.b16 %v627
        %v708 = vunpack.c.l.b16 %v628
        %v709 = vunpack.c.l.b16 %v629
        %v710 = vunpack.c.l.b16 %v630
        %v711 = vunpack.c.l.b16 %v631
        %v712 = vunpack.c.l.b16 %v632
        %v713 = vunpack.c.l.b16 %v633
        %v714 = vunpack.c.l.b16 %v634
        %v715 = vunpack.c.l.b16 %v635
        %v716 = vunpack.c.l.b16 %v636
        %v717 = vunpack.c.l.b16 %v637
        %v718 = vpack.c.b16 %v687, %v686
        %v719 = vpack.c.b16 %v689, %v688
        %v720 = vpack.c.b16 %v691, %v690
        %v721 = vpack.c.b16 %v693, %v692
        %v722 = vpack.c.b16 %v695, %v694
        %v723 = vpack.c.b16 %v697, %v696
        %v724 = vpack.c.b16 %v699, %v698
        %v725 = vpack.c.b16 %v701, %v700
        %v726 = vpack.c.b16 %v703, %v702
        %v727 = vpack.c.b16 %v705, %v704
        %v728 = vpack.c.b16 %v707, %v706
        %v729 = vpack.c.b16 %v709, %v708
        %v730 = vpack.c.b16 %v711, %v710
        %v731 = vpack.c.b16 %v713, %v712
        %v732 = vpack.c.b16 %v715, %v714
        %v733 = vpack.c.b16 %v717, %v716
        %v766 = vunpack.c.l.b16 %v638
        %v767 = vunpack.c.l.b16 %v639
        %v768 = vunpack.c.l.b16 %v640
        %v769 = vunpack.c.l.b16 %v641
        %v770 = vunpack.c.l.b16 %v642
        %v771 = vunpack.c.l.b16 %v643
        %v772 = vunpack.c.l.b16 %v644
        %v773 = vunpack.c.l.b16 %v645
        %v774 = vunpack.c.l.b16 %v646
        %v775 = vunpack.c.l.b16 %v647
        %v776 = vunpack.c.l.b16 %v648
        %v777 = vunpack.c.l.b16 %v649
        %v778 = vunpack.c.l.b16 %v650
        %v779 = vunpack.c.l.b16 %v651
        %v780 = vunpack.c.l.b16 %v652
        %v781 = vunpack.c.l.b16 %v653
        %v782 = vpack.c.b16 %v767, %v766
        %v783 = vpack.c.b16 %v769, %v768
        %v784 = vpack.c.b16 %v771, %v770
        %v785 = vpack.c.b16 %v773, %v772
        %v786 = vpack.c.b16 %v775, %v774
        %v787 = vpack.c.b16 %v777, %v776
        %v788 = vpack.c.b16 %v779, %v778
        %v789 = vpack.c.b16 %v781, %v780
        %798 = vmatpush.bf16.msra.mxu0 %v789
        %799 = vmatpush.bf16.msra.mxu0 %v788
        %800 = vmatpush.bf16.msra.mxu0 %v787
        %801 = vmatpush.bf16.msra.mxu0 %v786
        %802 = vmatpush.bf16.msra.mxu0 %v785
        %803 = vmatpush.bf16.msra.mxu0 %v784
        %804 = vmatpush.bf16.msra.mxu0 %v783
        %805 = vmatpush.bf16.msra.mxu0 %v782
        %806 = vmatmul.bf16.gmra.mxu0 %v718
        %v807 = vpop.f32.mrf.mxu0
        %v808 = vadd.f32 0.0, %v807
        %v809 = vpop.f32.mrf.mxu0
        %v810 = vadd.f32 0.0, %v809
        %811 = vmatmul.bf16.gmra.mxu0 %v719
        %v812 = vpop.f32.mrf.mxu0
        %v813 = vadd.f32 0.0, %v812
        %v814 = vpop.f32.mrf.mxu0
        %v815 = vadd.f32 0.0, %v814
        %816 = vmatmul.bf16.gmra.mxu0 %v720
        %v817 = vpop.f32.mrf.mxu0
        %v818 = vadd.f32 0.0, %v817
        %v819 = vpop.f32.mrf.mxu0
        %v820 = vadd.f32 0.0, %v819
        %821 = vmatmul.bf16.gmra.mxu0 %v721
        %v822 = vpop.f32.mrf.mxu0
        %v823 = vadd.f32 0.0, %v822
        %v824 = vpop.f32.mrf.mxu0
        %v825 = vadd.f32 0.0, %v824
        %826 = vmatmul.bf16.gmra.mxu0 %v722
        %v827 = vpop.f32.mrf.mxu0
        %v828 = vadd.f32 0.0, %v827
        %v829 = vpop.f32.mrf.mxu0
        %v830 = vadd.f32 0.0, %v829
        %831 = vmatmul.bf16.gmra.mxu0 %v723
        %v832 = vpop.f32.mrf.mxu0
        %v833 = vadd.f32 0.0, %v832
        %v834 = vpop.f32.mrf.mxu0
        %v835 = vadd.f32 0.0, %v834
        %836 = vmatmul.bf16.gmra.mxu0 %v724
        %v837 = vpop.f32.mrf.mxu0
        %v838 = vadd.f32 0.0, %v837
        %v839 = vpop.f32.mrf.mxu0
        %v840 = vadd.f32 0.0, %v839
        %841 = vmatmul.bf16.gmra.mxu0 %v725
        %v842 = vpop.f32.mrf.mxu0
        %v843 = vadd.f32 0.0, %v842
        %v844 = vpop.f32.mrf.mxu0
        %v845 = vadd.f32 0.0, %v844
        %846 = vmatmul.bf16.gmra.mxu0 %v726
        %v847 = vpop.f32.mrf.mxu0
        %v848 = vadd.f32 0.0, %v847
        %v849 = vpop.f32.mrf.mxu0
        %v850 = vadd.f32 0.0, %v849
        %851 = vmatmul.bf16.gmra.mxu0 %v727
        %v852 = vpop.f32.mrf.mxu0
        %v853 = vadd.f32 0.0, %v852
        %v854 = vpop.f32.mrf.mxu0
        %v855 = vadd.f32 0.0, %v854
        %856 = vmatmul.bf16.gmra.mxu0 %v728
        %v857 = vpop.f32.mrf.mxu0
        %v858 = vadd.f32 0.0, %v857
        %v859 = vpop.f32.mrf.mxu0
        %v860 = vadd.f32 0.0, %v859
        %861 = vmatmul.bf16.gmra.mxu0 %v729
        %v862 = vpop.f32.mrf.mxu0
        %v863 = vadd.f32 0.0, %v862
        %v864 = vpop.f32.mrf.mxu0
        %v865 = vadd.f32 0.0, %v864
        %866 = vmatmul.bf16.gmra.mxu0 %v730
        %v867 = vpop.f32.mrf.mxu0
        %v868 = vadd.f32 0.0, %v867
        %v869 = vpop.f32.mrf.mxu0
        %v870 = vadd.f32 0.0, %v869
        %871 = vmatmul.bf16.gmra.mxu0 %v731
        %v872 = vpop.f32.mrf.mxu0
        %v873 = vadd.f32 0.0, %v872
        %v874 = vpop.f32.mrf.mxu0
        %v875 = vadd.f32 0.0, %v874
        %876 = vmatmul.bf16.gmra.mxu0 %v732
        %v877 = vpop.f32.mrf.mxu0
        %v878 = vadd.f32 0.0, %v877
        %v879 = vpop.f32.mrf.mxu0
        %v880 = vadd.f32 0.0, %v879
        %881 = vmatmul.bf16.gmra.mxu0 %v733
        %v882 = vpop.f32.mrf.mxu0
        %v883 = vadd.f32 0.0, %v882
        %v884 = vpop.f32.mrf.mxu0
        %v885 = vadd.f32 0.0, %v884
        %886 = vdwg.mxu0
        %v887 = vpack.c.bf16 %v808, %v808
        %v888 = vpack.c.bf16 %v810, %v810
        %v889 = vpack.c.bf16 %v813, %v813
        %v890 = vpack.c.bf16 %v815, %v815
        %v891 = vpack.c.bf16 %v818, %v818
        %v892 = vpack.c.bf16 %v820, %v820
        %v893 = vpack.c.bf16 %v823, %v823
        %v894 = vpack.c.bf16 %v825, %v825
        %v895 = vpack.c.bf16 %v828, %v828
        %v896 = vpack.c.bf16 %v830, %v830
        %v897 = vpack.c.bf16 %v833, %v833
        %v898 = vpack.c.bf16 %v835, %v835
        %v899 = vpack.c.bf16 %v838, %v838
        %v900 = vpack.c.bf16 %v840, %v840
        %v901 = vpack.c.bf16 %v843, %v843
        %v902 = vpack.c.bf16 %v845, %v845
        %v903 = vpack.c.bf16 %v848, %v848
        %v904 = vpack.c.bf16 %v850, %v850
        %v905 = vpack.c.bf16 %v853, %v853
        %v906 = vpack.c.bf16 %v855, %v855
        %v907 = vpack.c.bf16 %v858, %v858
        %v908 = vpack.c.bf16 %v860, %v860
        %v909 = vpack.c.bf16 %v863, %v863
        %v910 = vpack.c.bf16 %v865, %v865
        %v911 = vpack.c.bf16 %v868, %v868
        %v912 = vpack.c.bf16 %v870, %v870
        %v913 = vpack.c.bf16 %v873, %v873
        %v914 = vpack.c.bf16 %v875, %v875
        %v915 = vpack.c.bf16 %v878, %v878
        %v916 = vpack.c.bf16 %v880, %v880
        %v917 = vpack.c.bf16 %v883, %v883
        %v918 = vpack.c.bf16 %v885, %v885
        %919 = vst [vmem:[#allocation2] sm:$0xf] %v887
        %920 = vst [vmem:[#allocation2 + $0x4] sm:$0xf] %v888
        %921 = vst [vmem:[#allocation2 + $0x8] sm:$0xf] %v889
        %922 = vst [vmem:[#allocation2 + $0xc] sm:$0xf] %v890
        %923 = vst [vmem:[#allocation2 + $0x10] sm:$0xf] %v891
        %924 = vst [vmem:[#allocation2 + $0x14] sm:$0xf] %v892
        %925 = vst [vmem:[#allocation2 + $0x18] sm:$0xf] %v893
        %926 = vst [vmem:[#allocation2 + $0x1c] sm:$0xf] %v894
        %927 = vst [vmem:[#allocation2 + $0x20] sm:$0xf] %v895
        %928 = vst [vmem:[#allocation2 + $0x24] sm:$0xf] %v896
        %929 = vst [vmem:[#allocation2 + $0x28] sm:$0xf] %v897
        %930 = vst [vmem:[#allocation2 + $0x2c] sm:$0xf] %v898
        %931 = vst [vmem:[#allocation2 + $0x30] sm:$0xf] %v899
        %932 = vst [vmem:[#allocation2 + $0x34] sm:$0xf] %v900
        %933 = vst [vmem:[#allocation2 + $0x38] sm:$0xf] %v901
        %934 = vst [vmem:[#allocation2 + $0x3c] sm:$0xf] %v902
        %935 = vst [vmem:[#allocation2 + $0x40] sm:$0xf] %v903
        %936 = vst [vmem:[#allocation2 + $0x44] sm:$0xf] %v904
        %937 = vst [vmem:[#allocation2 + $0x48] sm:$0xf] %v905
        %938 = vst [vmem:[#allocation2 + $0x4c] sm:$0xf] %v906
        %939 = vst [vmem:[#allocation2 + $0x50] sm:$0xf] %v907
        %940 = vst [vmem:[#allocation2 + $0x54] sm:$0xf] %v908
        %941 = vst [vmem:[#allocation2 + $0x58] sm:$0xf] %v909
        %942 = vst [vmem:[#allocation2 + $0x5c] sm:$0xf] %v910
        %943 = vst [vmem:[#allocation2 + $0x60] sm:$0xf] %v911
        %944 = vst [vmem:[#allocation2 + $0x64] sm:$0xf] %v912
        %945 = vst [vmem:[#allocation2 + $0x68] sm:$0xf] %v913
        %946 = vst [vmem:[#allocation2 + $0x6c] sm:$0xf] %v914
        %947 = vst [vmem:[#allocation2 + $0x70] sm:$0xf] %v915
        %948 = vst [vmem:[#allocation2 + $0x74] sm:$0xf] %v916
        %949 = vst [vmem:[#allocation2 + $0x78] sm:$0xf] %v917
        %950 = vst [vmem:[#allocation2 + $0x7c] sm:$0xf] %v918
      $region52: #{attack_model_forward.1} parent=43 // pred_fallthru
        _
      %s951 = smul.u32 %s22, 256
      %s952 = sshra.s32 %s951, 3
      %s953 = sand.u32 %s951, 7
      %s954 = smul.u32 %s952, 2
      %s955 = smul.addr %s954, 4
      %s956 = scalar_lea.vmem %s0, %s955
      %v957 = vld [vmem:[%s956] sm:$0xff]
      %v958 = vld [vmem:[%s956 + $0x8] sm:$0xff]
      %v959 = vld [vmem:[%s956 + $0x10] sm:$0xff]
      %v960 = vld [vmem:[%s956 + $0x18] sm:$0xff]
      %v961 = vld [vmem:[%s956 + $0x20] sm:$0xff]
      %v962 = vld [vmem:[%s956 + $0x28] sm:$0xff]
      %v963 = vld [vmem:[%s956 + $0x30] sm:$0xff]
      %v964 = vld [vmem:[%s956 + $0x38] sm:$0xff]
      %v965 = vld [vmem:[%s956 + $0x40] sm:$0xff]
      %v966 = vld [vmem:[%s956 + $0x48] sm:$0xff]
      %v967 = vld [vmem:[%s956 + $0x50] sm:$0xff]
      %v968 = vld [vmem:[%s956 + $0x58] sm:$0xff]
      %v969 = vld [vmem:[%s956 + $0x60] sm:$0xff]
      %v970 = vld [vmem:[%s956 + $0x68] sm:$0xff]
      %v971 = vld [vmem:[%s956 + $0x70] sm:$0xff]
      %v972 = vld [vmem:[%s956 + $0x78] sm:$0xff]
      %v973 = vld [vmem:[%s956 + $0x80] sm:$0xff]
      %v974 = vld [vmem:[%s956 + $0x88] sm:$0xff]
      %v975 = vld [vmem:[%s956 + $0x90] sm:$0xff]
      %v976 = vld [vmem:[%s956 + $0x98] sm:$0xff]
      %v977 = vld [vmem:[%s956 + $0xa0] sm:$0xff]
      %v978 = vld [vmem:[%s956 + $0xa8] sm:$0xff]
      %v979 = vld [vmem:[%s956 + $0xb0] sm:$0xff]
      %v980 = vld [vmem:[%s956 + $0xb8] sm:$0xff]
      %v981 = vld [vmem:[%s956 + $0xc0] sm:$0xff]
      %v982 = vld [vmem:[%s956 + $0xc8] sm:$0xff]
      %v983 = vld [vmem:[%s956 + $0xd0] sm:$0xff]
      %v984 = vld [vmem:[%s956 + $0xd8] sm:$0xff]
      %v985 = vld [vmem:[%s956 + $0xe0] sm:$0xff]
      %v986 = vld [vmem:[%s956 + $0xe8] sm:$0xff]
      %v987 = vld [vmem:[%s956 + $0xf0] sm:$0xff]
      %v988 = vld [vmem:[%s956 + $0xf8] sm:$0xff]
      %v989 = vld [vmem:[#allocation2] sm:$0xf]
      %v990 = vld [vmem:[#allocation2 + $0x4] sm:$0xf]
      %v991 = vld [vmem:[#allocation2 + $0x8] sm:$0xf]
      %v992 = vld [vmem:[#allocation2 + $0xc] sm:$0xf]
      %v993 = vld [vmem:[#allocation2 + $0x10] sm:$0xf]
      %v994 = vld [vmem:[#allocation2 + $0x14] sm:$0xf]
      %v995 = vld [vmem:[#allocation2 + $0x18] sm:$0xf]
      %v996 = vld [vmem:[#allocation2 + $0x1c] sm:$0xf]
      %v997 = vld [vmem:[#allocation2 + $0x20] sm:$0xf]
      %v998 = vld [vmem:[#allocation2 + $0x24] sm:$0xf]
      %v999 = vld [vmem:[#allocation2 + $0x28] sm:$0xf]
      %v1000 = vld [vmem:[#allocation2 + $0x2c] sm:$0xf]
      %v1001 = vld [vmem:[#allocation2 + $0x30] sm:$0xf]
      %v1002 = vld [vmem:[#allocation2 + $0x34] sm:$0xf]
      %v1003 = vld [vmem:[#allocation2 + $0x38] sm:$0xf]
      %v1004 = vld [vmem:[#allocation2 + $0x3c] sm:$0xf]
      %v1005 = vld [vmem:[#allocation2 + $0x40] sm:$0xf]
      %v1006 = vld [vmem:[#allocation2 + $0x44] sm:$0xf]
      %v1007 = vld [vmem:[#allocation2 + $0x48] sm:$0xf]
      %v1008 = vld [vmem:[#allocation2 + $0x4c] sm:$0xf]
      %v1009 = vld [vmem:[#allocation2 + $0x50] sm:$0xf]
      %v1010 = vld [vmem:[#allocation2 + $0x54] sm:$0xf]
      %v1011 = vld [vmem:[#allocation2 + $0x58] sm:$0xf]
      %v1012 = vld [vmem:[#allocation2 + $0x5c] sm:$0xf]
      %v1013 = vld [vmem:[#allocation2 + $0x60] sm:$0xf]
      %v1014 = vld [vmem:[#allocation2 + $0x64] sm:$0xf]
      %v1015 = vld [vmem:[#allocation2 + $0x68] sm:$0xf]
      %v1016 = vld [vmem:[#allocation2 + $0x6c] sm:$0xf]
      %v1017 = vld [vmem:[#allocation2 + $0x70] sm:$0xf]
      %v1018 = vld [vmem:[#allocation2 + $0x74] sm:$0xf]
      %v1019 = vld [vmem:[#allocation2 + $0x78] sm:$0xf]
      %v1020 = vld [vmem:[#allocation2 + $0x7c] sm:$0xf]
      %v1053 = vunpack.c.l.b16 %v957
      %v1054 = vunpack.c.h.b16 %v957
      %v1055 = vunpack.c.l.b16 %v958
      %v1056 = vunpack.c.h.b16 %v958
      %v1057 = vunpack.c.l.b16 %v959
      %v1058 = vunpack.c.h.b16 %v959
      %v1059 = vunpack.c.l.b16 %v960
      %v1060 = vunpack.c.h.b16 %v960
      %v1061 = vunpack.c.l.b16 %v961
      %v1062 = vunpack.c.h.b16 %v961
      %v1063 = vunpack.c.l.b16 %v962
      %v1064 = vunpack.c.h.b16 %v962
      %v1065 = vunpack.c.l.b16 %v963
      %v1066 = vunpack.c.h.b16 %v963
      %v1067 = vunpack.c.l.b16 %v964
      %v1068 = vunpack.c.h.b16 %v964
      %v1069 = vunpack.c.l.b16 %v965
      %v1070 = vunpack.c.h.b16 %v965
      %v1071 = vunpack.c.l.b16 %v966
      %v1072 = vunpack.c.h.b16 %v966
      %v1073 = vunpack.c.l.b16 %v967
      %v1074 = vunpack.c.h.b16 %v967
      %v1075 = vunpack.c.l.b16 %v968
      %v1076 = vunpack.c.h.b16 %v968
      %v1077 = vunpack.c.l.b16 %v969
      %v1078 = vunpack.c.h.b16 %v969
      %v1079 = vunpack.c.l.b16 %v970
      %v1080 = vunpack.c.h.b16 %v970
      %v1081 = vunpack.c.l.b16 %v971
      %v1082 = vunpack.c.h.b16 %v971
      %v1083 = vunpack.c.l.b16 %v972
      %v1084 = vunpack.c.h.b16 %v972
      %v1085 = vunpack.c.l.b16 %v973
      %v1086 = vunpack.c.h.b16 %v973
      %v1087 = vunpack.c.l.b16 %v974
      %v1088 = vunpack.c.h.b16 %v974
      %v1089 = vunpack.c.l.b16 %v975
      %v1090 = vunpack.c.h.b16 %v975
      %v1091 = vunpack.c.l.b16 %v976
      %v1092 = vunpack.c.h.b16 %v976
      %v1093 = vunpack.c.l.b16 %v977
      %v1094 = vunpack.c.h.b16 %v977
      %v1095 = vunpack.c.l.b16 %v978
      %v1096 = vunpack.c.h.b16 %v978
      %v1097 = vunpack.c.l.b16 %v979
      %v1098 = vunpack.c.h.b16 %v979
      %v1099 = vunpack.c.l.b16 %v980
      %v1100 = vunpack.c.h.b16 %v980
      %v1101 = vunpack.c.l.b16 %v981
      %v1102 = vunpack.c.h.b16 %v981
      %v1103 = vunpack.c.l.b16 %v982
      %v1104 = vunpack.c.h.b16 %v982
      %v1105 = vunpack.c.l.b16 %v983
      %v1106 = vunpack.c.h.b16 %v983
      %v1107 = vunpack.c.l.b16 %v984
      %v1108 = vunpack.c.h.b16 %v984
      %v1109 = vunpack.c.l.b16 %v985
      %v1110 = vunpack.c.h.b16 %v985
      %v1111 = vunpack.c.l.b16 %v986
      %v1112 = vunpack.c.h.b16 %v986
      %v1113 = vunpack.c.l.b16 %v987
      %v1114 = vunpack.c.h.b16 %v987
      %v1115 = vunpack.c.l.b16 %v988
      %v1116 = vunpack.c.h.b16 %v988
      %v1117 = vpack.c.b16 %v1055, %v1053
      %v1118 = vpack.c.b16 %v1056, %v1054
      %v1119 = vpack.c.b16 %v1059, %v1057
      %v1120 = vpack.c.b16 %v1060, %v1058
      %v1121 = vpack.c.b16 %v1063, %v1061
      %v1122 = vpack.c.b16 %v1064, %v1062
      %v1123 = vpack.c.b16 %v1067, %v1065
      %v1124 = vpack.c.b16 %v1068, %v1066
      %v1125 = vpack.c.b16 %v1071, %v1069
      %v1126 = vpack.c.b16 %v1072, %v1070
      %v1127 = vpack.c.b16 %v1075, %v1073
      %v1128 = vpack.c.b16 %v1076, %v1074
      %v1129 = vpack.c.b16 %v1079, %v1077
      %v1130 = vpack.c.b16 %v1080, %v1078
      %v1131 = vpack.c.b16 %v1083, %v1081
      %v1132 = vpack.c.b16 %v1084, %v1082
      %v1133 = vpack.c.b16 %v1087, %v1085
      %v1134 = vpack.c.b16 %v1088, %v1086
      %v1135 = vpack.c.b16 %v1091, %v1089
      %v1136 = vpack.c.b16 %v1092, %v1090
      %v1137 = vpack.c.b16 %v1095, %v1093
      %v1138 = vpack.c.b16 %v1096, %v1094
      %v1139 = vpack.c.b16 %v1099, %v1097
      %v1140 = vpack.c.b16 %v1100, %v1098
      %v1141 = vpack.c.b16 %v1103, %v1101
      %v1142 = vpack.c.b16 %v1104, %v1102
      %v1143 = vpack.c.b16 %v1107, %v1105
      %v1144 = vpack.c.b16 %v1108, %v1106
      %v1145 = vpack.c.b16 %v1111, %v1109
      %v1146 = vpack.c.b16 %v1112, %v1110
      %v1147 = vpack.c.b16 %v1115, %v1113
      %v1148 = vpack.c.b16 %v1116, %v1114
      %v1213 = vunpack.c.l.b16 %v989
      %v1214 = vunpack.c.l.b16 %v990
      %v1215 = vunpack.c.l.b16 %v991
      %v1216 = vunpack.c.l.b16 %v992
      %v1217 = vunpack.c.l.b16 %v993
      %v1218 = vunpack.c.l.b16 %v994
      %v1219 = vunpack.c.l.b16 %v995
      %v1220 = vunpack.c.l.b16 %v996
      %v1221 = vunpack.c.l.b16 %v997
      %v1222 = vunpack.c.l.b16 %v998
      %v1223 = vunpack.c.l.b16 %v999
      %v1224 = vunpack.c.l.b16 %v1000
      %v1225 = vunpack.c.l.b16 %v1001
      %v1226 = vunpack.c.l.b16 %v1002
      %v1227 = vunpack.c.l.b16 %v1003
      %v1228 = vunpack.c.l.b16 %v1004
      %v1229 = vunpack.c.l.b16 %v1005
      %v1230 = vunpack.c.l.b16 %v1006
      %v1231 = vunpack.c.l.b16 %v1007
      %v1232 = vunpack.c.l.b16 %v1008
      %v1233 = vunpack.c.l.b16 %v1009
      %v1234 = vunpack.c.l.b16 %v1010
      %v1235 = vunpack.c.l.b16 %v1011
      %v1236 = vunpack.c.l.b16 %v1012
      %v1237 = vunpack.c.l.b16 %v1013
      %v1238 = vunpack.c.l.b16 %v1014
      %v1239 = vunpack.c.l.b16 %v1015
      %v1240 = vunpack.c.l.b16 %v1016
      %v1241 = vunpack.c.l.b16 %v1017
      %v1242 = vunpack.c.l.b16 %v1018
      %v1243 = vunpack.c.l.b16 %v1019
      %v1244 = vunpack.c.l.b16 %v1020
      %v1245 = vpack.c.b16 %v1214, %v1213
      %v1246 = vpack.c.b16 %v1216, %v1215
      %v1247 = vpack.c.b16 %v1218, %v1217
      %v1248 = vpack.c.b16 %v1220, %v1219
      %v1249 = vpack.c.b16 %v1222, %v1221
      %v1250 = vpack.c.b16 %v1224, %v1223
      %v1251 = vpack.c.b16 %v1226, %v1225
      %v1252 = vpack.c.b16 %v1228, %v1227
      %v1253 = vpack.c.b16 %v1230, %v1229
      %v1254 = vpack.c.b16 %v1232, %v1231
      %v1255 = vpack.c.b16 %v1234, %v1233
      %v1256 = vpack.c.b16 %v1236, %v1235
      %v1257 = vpack.c.b16 %v1238, %v1237
      %v1258 = vpack.c.b16 %v1240, %v1239
      %v1259 = vpack.c.b16 %v1242, %v1241
      %v1260 = vpack.c.b16 %v1244, %v1243
      %1277 = vmatpush.bf16.msra.mxu0 %v1252
      %1278 = vmatpush.bf16.msra.mxu0 %v1251
      %1279 = vmatpush.bf16.msra.mxu0 %v1250
      %1280 = vmatpush.bf16.msra.mxu0 %v1249
      %1281 = vmatpush.bf16.msra.mxu0 %v1248
      %1282 = vmatpush.bf16.msra.mxu0 %v1247
      %1283 = vmatpush.bf16.msra.mxu0 %v1246
      %1284 = vmatpush.bf16.msra.mxu0 %v1245
      %1285 = vmatmul.bf16.gmra.mxu0 %v1117
      %v1286 = vpop.f32.mrf.mxu0
      %v1287 = vadd.f32 0.0, %v1286
      %v1288 = vpop.f32.mrf.mxu0
      %v1289 = vadd.f32 0.0, %v1288
      %1290 = vmatmul.bf16.gmra.mxu0 %v1119
      %v1291 = vpop.f32.mrf.mxu0
      %v1292 = vadd.f32 0.0, %v1291
      %v1293 = vpop.f32.mrf.mxu0
      %v1294 = vadd.f32 0.0, %v1293
      %1295 = vmatmul.bf16.gmra.mxu0 %v1121
      %v1296 = vpop.f32.mrf.mxu0
      %v1297 = vadd.f32 0.0, %v1296
      %v1298 = vpop.f32.mrf.mxu0
      %v1299 = vadd.f32 0.0, %v1298
      %1300 = vmatmul.bf16.gmra.mxu0 %v1123
      %v1301 = vpop.f32.mrf.mxu0
      %v1302 = vadd.f32 0.0, %v1301
      %v1303 = vpop.f32.mrf.mxu0
      %v1304 = vadd.f32 0.0, %v1303
      %1305 = vmatmul.bf16.gmra.mxu0 %v1125
      %v1306 = vpop.f32.mrf.mxu0
      %v1307 = vadd.f32 0.0, %v1306
      %v1308 = vpop.f32.mrf.mxu0
      %v1309 = vadd.f32 0.0, %v1308
      %1310 = vmatmul.bf16.gmra.mxu0 %v1127
      %v1311 = vpop.f32.mrf.mxu0
      %v1312 = vadd.f32 0.0, %v1311
      %v1313 = vpop.f32.mrf.mxu0
      %v1314 = vadd.f32 0.0, %v1313
      %1315 = vmatmul.bf16.gmra.mxu0 %v1129
      %v1316 = vpop.f32.mrf.mxu0
      %v1317 = vadd.f32 0.0, %v1316
      %v1318 = vpop.f32.mrf.mxu0
      %v1319 = vadd.f32 0.0, %v1318
      %1320 = vmatmul.bf16.gmra.mxu0 %v1131
      %v1321 = vpop.f32.mrf.mxu0
      %v1322 = vadd.f32 0.0, %v1321
      %v1323 = vpop.f32.mrf.mxu0
      %v1324 = vadd.f32 0.0, %v1323
      %1325 = vmatmul.bf16.gmra.mxu0 %v1133
      %v1326 = vpop.f32.mrf.mxu0
      %v1327 = vadd.f32 0.0, %v1326
      %v1328 = vpop.f32.mrf.mxu0
      %v1329 = vadd.f32 0.0, %v1328
      %1330 = vmatmul.bf16.gmra.mxu0 %v1135
      %v1331 = vpop.f32.mrf.mxu0
      %v1332 = vadd.f32 0.0, %v1331
      %v1333 = vpop.f32.mrf.mxu0
      %v1334 = vadd.f32 0.0, %v1333
      %1335 = vmatmul.bf16.gmra.mxu0 %v1137
      %v1336 = vpop.f32.mrf.mxu0
      %v1337 = vadd.f32 0.0, %v1336
      %v1338 = vpop.f32.mrf.mxu0
      %v1339 = vadd.f32 0.0, %v1338
      %1340 = vmatmul.bf16.gmra.mxu0 %v1139
      %v1341 = vpop.f32.mrf.mxu0
      %v1342 = vadd.f32 0.0, %v1341
      %v1343 = vpop.f32.mrf.mxu0
      %v1344 = vadd.f32 0.0, %v1343
      %1345 = vmatmul.bf16.gmra.mxu0 %v1141
      %v1346 = vpop.f32.mrf.mxu0
      %v1347 = vadd.f32 0.0, %v1346
      %v1348 = vpop.f32.mrf.mxu0
      %v1349 = vadd.f32 0.0, %v1348
      %1350 = vmatmul.bf16.gmra.mxu0 %v1143
      %v1351 = vpop.f32.mrf.mxu0
      %v1352 = vadd.f32 0.0, %v1351
      %v1353 = vpop.f32.mrf.mxu0
      %v1354 = vadd.f32 0.0, %v1353
      %1355 = vmatmul.bf16.gmra.mxu0 %v1145
      %v1356 = vpop.f32.mrf.mxu0
      %v1357 = vadd.f32 0.0, %v1356
      %v1358 = vpop.f32.mrf.mxu0
      %v1359 = vadd.f32 0.0, %v1358
      %1360 = vmatmul.bf16.gmra.mxu0 %v1147
      %v1361 = vpop.f32.mrf.mxu0
      %v1362 = vadd.f32 0.0, %v1361
      %v1363 = vpop.f32.mrf.mxu0
      %v1364 = vadd.f32 0.0, %v1363
      %1365 = vdwg.mxu0
      %1366 = vmatpush.bf16.msra.mxu0 %v1260
      %1367 = vmatpush.bf16.msra.mxu0 %v1259
      %1368 = vmatpush.bf16.msra.mxu0 %v1258
      %1369 = vmatpush.bf16.msra.mxu0 %v1257
      %1370 = vmatpush.bf16.msra.mxu0 %v1256
      %1371 = vmatpush.bf16.msra.mxu0 %v1255
      %1372 = vmatpush.bf16.msra.mxu0 %v1254
      %1373 = vmatpush.bf16.msra.mxu0 %v1253
      %1374 = vmatmul.bf16.gmra.mxu0 %v1118
      %v1375 = vpop.f32.mrf.mxu0
      %v1376 = vadd.f32 %v1287, %v1375
      %v1377 = vpop.f32.mrf.mxu0
      %v1378 = vadd.f32 %v1289, %v1377
      %1379 = vmatmul.bf16.gmra.mxu0 %v1120
      %v1380 = vpop.f32.mrf.mxu0
      %v1381 = vadd.f32 %v1292, %v1380
      %v1382 = vpop.f32.mrf.mxu0
      %v1383 = vadd.f32 %v1294, %v1382
      %1384 = vmatmul.bf16.gmra.mxu0 %v1122
      %v1385 = vpop.f32.mrf.mxu0
      %v1386 = vadd.f32 %v1297, %v1385
      %v1387 = vpop.f32.mrf.mxu0
      %v1388 = vadd.f32 %v1299, %v1387
      %1389 = vmatmul.bf16.gmra.mxu0 %v1124
      %v1390 = vpop.f32.mrf.mxu0
      %v1391 = vadd.f32 %v1302, %v1390
      %v1392 = vpop.f32.mrf.mxu0
      %v1393 = vadd.f32 %v1304, %v1392
      %1394 = vmatmul.bf16.gmra.mxu0 %v1126
      %v1395 = vpop.f32.mrf.mxu0
      %v1396 = vadd.f32 %v1307, %v1395
      %v1397 = vpop.f32.mrf.mxu0
      %v1398 = vadd.f32 %v1309, %v1397
      %1399 = vmatmul.bf16.gmra.mxu0 %v1128
      %v1400 = vpop.f32.mrf.mxu0
      %v1401 = vadd.f32 %v1312, %v1400
      %v1402 = vpop.f32.mrf.mxu0
      %v1403 = vadd.f32 %v1314, %v1402
      %1404 = vmatmul.bf16.gmra.mxu0 %v1130
      %v1405 = vpop.f32.mrf.mxu0
      %v1406 = vadd.f32 %v1317, %v1405
      %v1407 = vpop.f32.mrf.mxu0
      %v1408 = vadd.f32 %v1319, %v1407
      %1409 = vmatmul.bf16.gmra.mxu0 %v1132
      %v1410 = vpop.f32.mrf.mxu0
      %v1411 = vadd.f32 %v1322, %v1410
      %v1412 = vpop.f32.mrf.mxu0
      %v1413 = vadd.f32 %v1324, %v1412
      %1414 = vmatmul.bf16.gmra.mxu0 %v1134
      %v1415 = vpop.f32.mrf.mxu0
      %v1416 = vadd.f32 %v1327, %v1415
      %v1417 = vpop.f32.mrf.mxu0
      %v1418 = vadd.f32 %v1329, %v1417
      %1419 = vmatmul.bf16.gmra.mxu0 %v1136
      %v1420 = vpop.f32.mrf.mxu0
      %v1421 = vadd.f32 %v1332, %v1420
      %v1422 = vpop.f32.mrf.mxu0
      %v1423 = vadd.f32 %v1334, %v1422
      %1424 = vmatmul.bf16.gmra.mxu0 %v1138
      %v1425 = vpop.f32.mrf.mxu0
      %v1426 = vadd.f32 %v1337, %v1425
      %v1427 = vpop.f32.mrf.mxu0
      %v1428 = vadd.f32 %v1339, %v1427
      %1429 = vmatmul.bf16.gmra.mxu0 %v1140
      %v1430 = vpop.f32.mrf.mxu0
      %v1431 = vadd.f32 %v1342, %v1430
      %v1432 = vpop.f32.mrf.mxu0
      %v1433 = vadd.f32 %v1344, %v1432
      %1434 = vmatmul.bf16.gmra.mxu0 %v1142
      %v1435 = vpop.f32.mrf.mxu0
      %v1436 = vadd.f32 %v1347, %v1435
      %v1437 = vpop.f32.mrf.mxu0
      %v1438 = vadd.f32 %v1349, %v1437
      %1439 = vmatmul.bf16.gmra.mxu0 %v1144
      %v1440 = vpop.f32.mrf.mxu0
      %v1441 = vadd.f32 %v1352, %v1440
      %v1442 = vpop.f32.mrf.mxu0
      %v1443 = vadd.f32 %v1354, %v1442
      %1444 = vmatmul.bf16.gmra.mxu0 %v1146
      %v1445 = vpop.f32.mrf.mxu0
      %v1446 = vadd.f32 %v1357, %v1445
      %v1447 = vpop.f32.mrf.mxu0
      %v1448 = vadd.f32 %v1359, %v1447
      %1449 = vmatmul.bf16.gmra.mxu0 %v1148
      %v1450 = vpop.f32.mrf.mxu0
      %v1451 = vadd.f32 %v1362, %v1450
      %v1452 = vpop.f32.mrf.mxu0
      %v1453 = vadd.f32 %v1364, %v1452
      %1454 = vdwg.mxu0
      // Predicated region
      $region53: #{attack_model_forward.1} parent=43 // pred_check
        %p1455 = pneg %p250
      $region54: #{attack_model_forward.1} parent=43 // pred_check_branch
        %1457 = sbr.rel (%p1455) target = $region56
      $region55: #{attack_model_forward.1} parent=43 // pred_region
        %v1458 = vld [vmem:[%s3] sm:$0x1]
        %v1460 = vperm.slane %v1458, 0
        %v1462 = vadd.f32 %v1376, %v1460
        %v1463 = vadd.f32 %v1378, %v1460
        %v1464 = vadd.f32 %v1381, %v1460
        %v1465 = vadd.f32 %v1383, %v1460
        %v1466 = vadd.f32 %v1386, %v1460
        %v1467 = vadd.f32 %v1388, %v1460
        %v1468 = vadd.f32 %v1391, %v1460
        %v1469 = vadd.f32 %v1393, %v1460
        %v1470 = vadd.f32 %v1396, %v1460
        %v1471 = vadd.f32 %v1398, %v1460
        %v1472 = vadd.f32 %v1401, %v1460
        %v1473 = vadd.f32 %v1403, %v1460
        %v1474 = vadd.f32 %v1406, %v1460
        %v1475 = vadd.f32 %v1408, %v1460
        %v1476 = vadd.f32 %v1411, %v1460
        %v1477 = vadd.f32 %v1413, %v1460
        %v1478 = vadd.f32 %v1416, %v1460
        %v1479 = vadd.f32 %v1418, %v1460
        %v1480 = vadd.f32 %v1421, %v1460
        %v1481 = vadd.f32 %v1423, %v1460
        %v1482 = vadd.f32 %v1426, %v1460
        %v1483 = vadd.f32 %v1428, %v1460
        %v1484 = vadd.f32 %v1431, %v1460
        %v1485 = vadd.f32 %v1433, %v1460
        %v1486 = vadd.f32 %v1436, %v1460
        %v1487 = vadd.f32 %v1438, %v1460
        %v1488 = vadd.f32 %v1441, %v1460
        %v1489 = vadd.f32 %v1443, %v1460
        %v1490 = vadd.f32 %v1446, %v1460
        %v1491 = vadd.f32 %v1448, %v1460
        %v1492 = vadd.f32 %v1451, %v1460
        %v1493 = vadd.f32 %v1453, %v1460
        %v1494 = vmax.f32 %v1462, 0.0
        %v1495 = vmax.f32 %v1463, 0.0
        %v1496 = vmax.f32 %v1464, 0.0
        %v1497 = vmax.f32 %v1465, 0.0
        %v1498 = vmax.f32 %v1466, 0.0
        %v1499 = vmax.f32 %v1467, 0.0
        %v1500 = vmax.f32 %v1468, 0.0
        %v1501 = vmax.f32 %v1469, 0.0
        %v1502 = vmax.f32 %v1470, 0.0
        %v1503 = vmax.f32 %v1471, 0.0
        %v1504 = vmax.f32 %v1472, 0.0
        %v1505 = vmax.f32 %v1473, 0.0
        %v1506 = vmax.f32 %v1474, 0.0
        %v1507 = vmax.f32 %v1475, 0.0
        %v1508 = vmax.f32 %v1476, 0.0
        %v1509 = vmax.f32 %v1477, 0.0
        %v1510 = vmax.f32 %v1478, 0.0
        %v1511 = vmax.f32 %v1479, 0.0
        %v1512 = vmax.f32 %v1480, 0.0
        %v1513 = vmax.f32 %v1481, 0.0
        %v1514 = vmax.f32 %v1482, 0.0
        %v1515 = vmax.f32 %v1483, 0.0
        %v1516 = vmax.f32 %v1484, 0.0
        %v1517 = vmax.f32 %v1485, 0.0
        %v1518 = vmax.f32 %v1486, 0.0
        %v1519 = vmax.f32 %v1487, 0.0
        %v1520 = vmax.f32 %v1488, 0.0
        %v1521 = vmax.f32 %v1489, 0.0
        %v1522 = vmax.f32 %v1490, 0.0
        %v1523 = vmax.f32 %v1491, 0.0
        %v1524 = vmax.f32 %v1492, 0.0
        %v1525 = vmax.f32 %v1493, 0.0
        %v1526 = vpack.c.bf16 %v1494, %v1494
        %v1527 = vpack.c.bf16 %v1495, %v1495
        %v1528 = vpack.c.bf16 %v1496, %v1496
        %v1529 = vpack.c.bf16 %v1497, %v1497
        %v1530 = vpack.c.bf16 %v1498, %v1498
        %v1531 = vpack.c.bf16 %v1499, %v1499
        %v1532 = vpack.c.bf16 %v1500, %v1500
        %v1533 = vpack.c.bf16 %v1501, %v1501
        %v1534 = vpack.c.bf16 %v1502, %v1502
        %v1535 = vpack.c.bf16 %v1503, %v1503
        %v1536 = vpack.c.bf16 %v1504, %v1504
        %v1537 = vpack.c.bf16 %v1505, %v1505
        %v1538 = vpack.c.bf16 %v1506, %v1506
        %v1539 = vpack.c.bf16 %v1507, %v1507
        %v1540 = vpack.c.bf16 %v1508, %v1508
        %v1541 = vpack.c.bf16 %v1509, %v1509
        %v1542 = vpack.c.bf16 %v1510, %v1510
        %v1543 = vpack.c.bf16 %v1511, %v1511
        %v1544 = vpack.c.bf16 %v1512, %v1512
        %v1545 = vpack.c.bf16 %v1513, %v1513
        %v1546 = vpack.c.bf16 %v1514, %v1514
        %v1547 = vpack.c.bf16 %v1515, %v1515
        %v1548 = vpack.c.bf16 %v1516, %v1516
        %v1549 = vpack.c.bf16 %v1517, %v1517
        %v1550 = vpack.c.bf16 %v1518, %v1518
        %v1551 = vpack.c.bf16 %v1519, %v1519
        %v1552 = vpack.c.bf16 %v1520, %v1520
        %v1553 = vpack.c.bf16 %v1521, %v1521
        %v1554 = vpack.c.bf16 %v1522, %v1522
        %v1555 = vpack.c.bf16 %v1523, %v1523
        %v1556 = vpack.c.bf16 %v1524, %v1524
        %v1557 = vpack.c.bf16 %v1525, %v1525
        %s1558 = smul.addr %s952, 4
        %s1559 = scalar_lea.vmem [#allocation3], %s1558
        %1560 = vst [vmem:[%s1559] sm:$0xf] %v1526
        %1561 = vst [vmem:[%s1559 + $0x4] sm:$0xf] %v1527
        %1562 = vst [vmem:[%s1559 + $0x8] sm:$0xf] %v1528
        %1563 = vst [vmem:[%s1559 + $0xc] sm:$0xf] %v1529
        %1564 = vst [vmem:[%s1559 + $0x10] sm:$0xf] %v1530
        %1565 = vst [vmem:[%s1559 + $0x14] sm:$0xf] %v1531
        %1566 = vst [vmem:[%s1559 + $0x18] sm:$0xf] %v1532
        %1567 = vst [vmem:[%s1559 + $0x1c] sm:$0xf] %v1533
        %1568 = vst [vmem:[%s1559 + $0x20] sm:$0xf] %v1534
        %1569 = vst [vmem:[%s1559 + $0x24] sm:$0xf] %v1535
        %1570 = vst [vmem:[%s1559 + $0x28] sm:$0xf] %v1536
        %1571 = vst [vmem:[%s1559 + $0x2c] sm:$0xf] %v1537
        %1572 = vst [vmem:[%s1559 + $0x30] sm:$0xf] %v1538
        %1573 = vst [vmem:[%s1559 + $0x34] sm:$0xf] %v1539
        %1574 = vst [vmem:[%s1559 + $0x38] sm:$0xf] %v1540
        %1575 = vst [vmem:[%s1559 + $0x3c] sm:$0xf] %v1541
        %1576 = vst [vmem:[%s1559 + $0x40] sm:$0xf] %v1542
        %1577 = vst [vmem:[%s1559 + $0x44] sm:$0xf] %v1543
        %1578 = vst [vmem:[%s1559 + $0x48] sm:$0xf] %v1544
        %1579 = vst [vmem:[%s1559 + $0x4c] sm:$0xf] %v1545
        %1580 = vst [vmem:[%s1559 + $0x50] sm:$0xf] %v1546
        %1581 = vst [vmem:[%s1559 + $0x54] sm:$0xf] %v1547
        %1582 = vst [vmem:[%s1559 + $0x58] sm:$0xf] %v1548
        %1583 = vst [vmem:[%s1559 + $0x5c] sm:$0xf] %v1549
        %1584 = vst [vmem:[%s1559 + $0x60] sm:$0xf] %v1550
        %1585 = vst [vmem:[%s1559 + $0x64] sm:$0xf] %v1551
        %1586 = vst [vmem:[%s1559 + $0x68] sm:$0xf] %v1552
        %1587 = vst [vmem:[%s1559 + $0x6c] sm:$0xf] %v1553
        %1588 = vst [vmem:[%s1559 + $0x70] sm:$0xf] %v1554
        %1589 = vst [vmem:[%s1559 + $0x74] sm:$0xf] %v1555
        %1590 = vst [vmem:[%s1559 + $0x78] sm:$0xf] %v1556
        %1591 = vst [vmem:[%s1559 + $0x7c] sm:$0xf] %v1557
      $region56: #{attack_model_forward.1} parent=43 // pred_fallthru
        _
      // Predicated region
      $region57: #{attack_model_forward.1} parent=43 // pred_check
        %p1592 = pneg %p601
      $region58: #{attack_model_forward.1} parent=43 // pred_check_branch
        %1594 = sbr.rel (%p1592) target = $region60
      $region59: #{attack_model_forward.1} parent=43 // pred_region
        %v1595 = vld [vmem:[%s5] sm:$0x1]
        %v1597 = vperm.slane %v1595, 0
        %v1599 = vadd.f32 %v1376, %v1597
        %v1600 = vadd.f32 %v1378, %v1597
        %v1601 = vadd.f32 %v1381, %v1597
        %v1602 = vadd.f32 %v1383, %v1597
        %v1603 = vadd.f32 %v1386, %v1597
        %v1604 = vadd.f32 %v1388, %v1597
        %v1605 = vadd.f32 %v1391, %v1597
        %v1606 = vadd.f32 %v1393, %v1597
        %v1607 = vadd.f32 %v1396, %v1597
        %v1608 = vadd.f32 %v1398, %v1597
        %v1609 = vadd.f32 %v1401, %v1597
        %v1610 = vadd.f32 %v1403, %v1597
        %v1611 = vadd.f32 %v1406, %v1597
        %v1612 = vadd.f32 %v1408, %v1597
        %v1613 = vadd.f32 %v1411, %v1597
        %v1614 = vadd.f32 %v1413, %v1597
        %v1615 = vadd.f32 %v1416, %v1597
        %v1616 = vadd.f32 %v1418, %v1597
        %v1617 = vadd.f32 %v1421, %v1597
        %v1618 = vadd.f32 %v1423, %v1597
        %v1619 = vadd.f32 %v1426, %v1597
        %v1620 = vadd.f32 %v1428, %v1597
        %v1621 = vadd.f32 %v1431, %v1597
        %v1622 = vadd.f32 %v1433, %v1597
        %v1623 = vadd.f32 %v1436, %v1597
        %v1624 = vadd.f32 %v1438, %v1597
        %v1625 = vadd.f32 %v1441, %v1597
        %v1626 = vadd.f32 %v1443, %v1597
        %v1627 = vadd.f32 %v1446, %v1597
        %v1628 = vadd.f32 %v1448, %v1597
        %v1629 = vadd.f32 %v1451, %v1597
        %v1630 = vadd.f32 %v1453, %v1597
        %v1631 = vpack.c.bf16 %v1599, %v1599
        %v1632 = vpack.c.bf16 %v1600, %v1600
        %v1633 = vpack.c.bf16 %v1601, %v1601
        %v1634 = vpack.c.bf16 %v1602, %v1602
        %v1635 = vpack.c.bf16 %v1603, %v1603
        %v1636 = vpack.c.bf16 %v1604, %v1604
        %v1637 = vpack.c.bf16 %v1605, %v1605
        %v1638 = vpack.c.bf16 %v1606, %v1606
        %v1639 = vpack.c.bf16 %v1607, %v1607
        %v1640 = vpack.c.bf16 %v1608, %v1608
        %v1641 = vpack.c.bf16 %v1609, %v1609
        %v1642 = vpack.c.bf16 %v1610, %v1610
        %v1643 = vpack.c.bf16 %v1611, %v1611
        %v1644 = vpack.c.bf16 %v1612, %v1612
        %v1645 = vpack.c.bf16 %v1613, %v1613
        %v1646 = vpack.c.bf16 %v1614, %v1614
        %v1647 = vpack.c.bf16 %v1615, %v1615
        %v1648 = vpack.c.bf16 %v1616, %v1616
        %v1649 = vpack.c.bf16 %v1617, %v1617
        %v1650 = vpack.c.bf16 %v1618, %v1618
        %v1651 = vpack.c.bf16 %v1619, %v1619
        %v1652 = vpack.c.bf16 %v1620, %v1620
        %v1653 = vpack.c.bf16 %v1621, %v1621
        %v1654 = vpack.c.bf16 %v1622, %v1622
        %v1655 = vpack.c.bf16 %v1623, %v1623
        %v1656 = vpack.c.bf16 %v1624, %v1624
        %v1657 = vpack.c.bf16 %v1625, %v1625
        %v1658 = vpack.c.bf16 %v1626, %v1626
        %v1659 = vpack.c.bf16 %v1627, %v1627
        %v1660 = vpack.c.bf16 %v1628, %v1628
        %v1661 = vpack.c.bf16 %v1629, %v1629
        %v1662 = vpack.c.bf16 %v1630, %v1630
        %1663 = vst [vmem:[%s247] sm:$0xf] %v1631
        %1664 = vst [vmem:[%s247 + $0x4] sm:$0xf] %v1632
        %1665 = vst [vmem:[%s247 + $0x8] sm:$0xf] %v1633
        %1666 = vst [vmem:[%s247 + $0xc] sm:$0xf] %v1634
        %1667 = vst [vmem:[%s247 + $0x10] sm:$0xf] %v1635
        %1668 = vst [vmem:[%s247 + $0x14] sm:$0xf] %v1636
        %1669 = vst [vmem:[%s247 + $0x18] sm:$0xf] %v1637
        %1670 = vst [vmem:[%s247 + $0x1c] sm:$0xf] %v1638
        %1671 = vst [vmem:[%s247 + $0x20] sm:$0xf] %v1639
        %1672 = vst [vmem:[%s247 + $0x24] sm:$0xf] %v1640
        %1673 = vst [vmem:[%s247 + $0x28] sm:$0xf] %v1641
        %1674 = vst [vmem:[%s247 + $0x2c] sm:$0xf] %v1642
        %1675 = vst [vmem:[%s247 + $0x30] sm:$0xf] %v1643
        %1676 = vst [vmem:[%s247 + $0x34] sm:$0xf] %v1644
        %1677 = vst [vmem:[%s247 + $0x38] sm:$0xf] %v1645
        %1678 = vst [vmem:[%s247 + $0x3c] sm:$0xf] %v1646
        %1679 = vst [vmem:[%s247 + $0x40] sm:$0xf] %v1647
        %1680 = vst [vmem:[%s247 + $0x44] sm:$0xf] %v1648
        %1681 = vst [vmem:[%s247 + $0x48] sm:$0xf] %v1649
        %1682 = vst [vmem:[%s247 + $0x4c] sm:$0xf] %v1650
        %1683 = vst [vmem:[%s247 + $0x50] sm:$0xf] %v1651
        %1684 = vst [vmem:[%s247 + $0x54] sm:$0xf] %v1652
        %1685 = vst [vmem:[%s247 + $0x58] sm:$0xf] %v1653
        %1686 = vst [vmem:[%s247 + $0x5c] sm:$0xf] %v1654
        %1687 = vst [vmem:[%s247 + $0x60] sm:$0xf] %v1655
        %1688 = vst [vmem:[%s247 + $0x64] sm:$0xf] %v1656
        %1689 = vst [vmem:[%s247 + $0x68] sm:$0xf] %v1657
        %1690 = vst [vmem:[%s247 + $0x6c] sm:$0xf] %v1658
        %1691 = vst [vmem:[%s247 + $0x70] sm:$0xf] %v1659
        %1692 = vst [vmem:[%s247 + $0x74] sm:$0xf] %v1660
        %1693 = vst [vmem:[%s247 + $0x78] sm:$0xf] %v1661
        %1694 = vst [vmem:[%s247 + $0x7c] sm:$0xf] %v1662
      $region60: #{attack_model_forward.1} parent=43 // pred_fallthru
        _
      %s1695 = smul.u32 %s22, %s21
      %s1696 = smul.u32 32, %s1695
      %p1697 = scmp.lt.s32.totalorder %s1696, 31
      %s1698 = scalar_select %p1697, %s1696, 31
      %s1699 = smul.addr %s1698, 4
      %s1700 = scalar_lea.vmem %s6, %s1699
      // Predicated region
      $region61: #{attack_model_forward.1} parent=43 // pred_check
        %p1701 = pneg %p175
      $region62: #{attack_model_forward.1} parent=43 // pred_check_branch
        %1703 = sbr.rel (%p1701) target = $region64
      $region63: #{attack_model_forward.1} parent=43 // pred_region
        %s1704 = smul.u32 %s22, %s21
        %s1705 = smul.u32 32, %s1704
      $region64: #{attack_model_forward.1} parent=43 // pred_fallthru
        _
    $region44: #{attack_model_forward.1} parent=5 // pred_fallthru
      _
    %p1706 = scmp.le.s32.totalorder 2, %s12
    // Predicated region
    $region65: #{attack_model_forward.1} parent=5 // pred_check
      %p1707 = pneg %p1706
    $region66: #{attack_model_forward.1} parent=5 // pred_check_branch
      %1709 = sbr.rel (%p1707) target = $region68
    $region67: #{attack_model_forward.1} parent=5 // pred_region
      %s1710 = ssub.s32 %s12, 2
      // Predicated region
      $region69: #{attack_model_forward.1} parent=67 // pred_check
        %p1711 = pneg %p181
      $region70: #{attack_model_forward.1} parent=67 // pred_check_branch
        %1713 = sbr.rel (%p1711) target = $region72
      $region71: #{attack_model_forward.1} parent=67 // pred_region
        %s1714 = smul.u32 %s24, %s23
        %s1715 = smul.u32 32, %s1714
        %p1716 = scmp.lt.s32.totalorder %s1715, 31
        %s1717 = scalar_select %p1716, %s1715, 31
        %s1718 = smul.addr %s1717, 4
        %s1719 = scalar_lea.vmem %s6, %s1718
      $region72: #{attack_model_forward.1} parent=67 // pred_fallthru
        _
    $region68: #{attack_model_forward.1} parent=5 // pred_fallthru
      _
  $region6: #{attack_model_forward.1} parent=0 // loop_footer
    %s16 = sadd.s32 1, %s12
  $region7: #{attack_model_forward.1} parent=0 // loop_footer_branch
    %11 = sbr.rel target = $region3
  $region8: #{attack_model_forward.1} parent=0 // loop_exit
    _

</llo_original>
